<compile_context>
chip_gen: v5e
topology: v5e:2x2
jax: 0.10.0
libtpu: 0.0.40
codegen_flags: <defaults>
</compile_context>

<pallas_src>
import jax
import jax.numpy as jnp
from jax import lax
from jax.experimental import pallas as pl
from jax.experimental.pallas import tpu as pltpu


# ---------------------------------------------------------------------------
# helpers
# ---------------------------------------------------------------------------

def _vmem_capacity_bytes():
    """Physical VMEM capacity (fallback: 64 MiB, the smallest per-core across
    v5e/v6e/v7x)."""
    try:
        info = pltpu.get_tpu_info()
        cap = getattr(info, "vmem_capacity_bytes", None)
        if cap:
            return int(cap)
    except Exception:
        pass
    return 64 * 1024 * 1024


def _cost(flops, bytes_accessed):
    return pl.CostEstimate(flops=int(flops), transcendentals=0,
                           bytes_accessed=int(bytes_accessed))


def _round_up(a, b):
    return (a + b - 1) // b * b


def _choose_tile(n_pad, want):
    """Largest tile in {512, 256, 128} (capped at `want`) that divides n_pad,
    preferring tiles that leave >= 2 grid steps (keeps v7x megacore busy)."""
    cands = [t for t in (512, 256, 128) if t <= max(want, 128)]
    for t in cands:
        if n_pad % t == 0 and n_pad // t >= 2:
            return t
    for t in cands:
        if n_pad % t == 0:
            return t
    return 128


# ---------------------------------------------------------------------------
# kernels
# ---------------------------------------------------------------------------

def _make_fused_small_kernel(h2):
    """Whole forward pass with adj resident in VMEM (small-N fast path)."""

    def kernel(x_ref, adj_ref, w1_ref, w23_ref, recon_ref, mu_ref, lv_ref):
        s1 = jnp.dot(x_ref[...], w1_ref[...],
                     preferred_element_type=jnp.float32)
        h1 = jnp.maximum(
            jnp.dot(adj_ref[...], s1, preferred_element_type=jnp.float32), 0.0)
        s23 = jnp.dot(h1, w23_ref[...], preferred_element_type=jnp.float32)
        muvar = jnp.dot(adj_ref[...], s23,
                        preferred_element_type=jnp.float32)
        mu = muvar[:, :h2]
        mu_ref[...] = mu.astype(mu_ref.dtype)
        lv_ref[...] = muvar[:, h2:].astype(lv_ref.dtype)
        # recon = mu @ mu.T via transposed-RHS contraction (no XLU transpose)
        recon_ref[...] = lax.dot_general(
            mu, mu, dimension_numbers=(((1,), (1,)), ((), ())),
            preferred_element_type=jnp.float32).astype(recon_ref.dtype)

    return kernel


def _gc1_fused_kernel(adj_ref, x_ref, w1_ref, w23_ref, out_ref, acc_ref):
    """support23 row tile = relu(adj_row @ (x @ W1)) @ [W2|W3].

    The x@W1 projection (former K0) is recomputed per k-block; it hides
    entirely under the HBM-bound adj stream and saves the support1 HBM
    round-trip plus one kernel launch."""
    k = pl.program_id(1)

    @pl.when(k == 0)
    def _():
        acc_ref[...] = jnp.zeros_like(acc_ref)

    s1_k = jnp.dot(x_ref[...], w1_ref[...],
                   preferred_element_type=jnp.float32)
    acc_ref[...] += jnp.dot(adj_ref[...], s1_k,
                            preferred_element_type=jnp.float32)

    @pl.when(k == pl.num_programs(1) - 1)
    def _():
        hidden1 = jnp.maximum(acc_ref[...], 0.0)
        out_ref[...] = jnp.dot(
            hidden1, w23_ref[...],
            preferred_element_type=jnp.float32).astype(out_ref.dtype)


def _make_gc2_kernel(h2):
    """(mu, logvar) row tiles = split(adj @ support23)."""

    def kernel(adj_ref, s23_ref, mu_ref, lv_ref, acc_ref):
        k = pl.program_id(1)

        @pl.when(k == 0)
        def _():
            acc_ref[...] = jnp.zeros_like(acc_ref)

        acc_ref[...] += jnp.dot(adj_ref[...], s23_ref[...],
                                preferred_element_type=jnp.float32)

        @pl.when(k == pl.num_programs(1) - 1)
        def _():
            mu_ref[...] = acc_ref[:, :h2].astype(mu_ref.dtype)
            lv_ref[...] = acc_ref[:, h2:].astype(lv_ref.dtype)

    return kernel


def _recon_kernel(mu_i_ref, mu_j_ref, out_ref):
    """recon tile = mu_i @ mu_j.T (transposed-RHS contraction, lane-wide out)."""
    out_ref[...] = lax.dot_general(
        mu_i_ref[...], mu_j_ref[...],
        dimension_numbers=(((1,), (1,)), ((), ())),
        preferred_element_type=jnp.float32).astype(out_ref.dtype)


# ---------------------------------------------------------------------------
# wrapper
# ---------------------------------------------------------------------------

def gcn_model_vae_forward(x, adj, w1, w2, w3, *, tm=512, tk=512, tn=512,
                          use_fused=None):
    """Pallas forward pass.

    Shapes: x (N,F), adj (N,N), w1 (F,H1), w2/w3 (H1,H2).
    Returns (recon (N,N), mu (N,H2), logvar (N,H2)).
    """
    N, F = x.shape
    H1 = w1.shape[1]
    H2 = w2.shape[1]
    assert adj.shape == (N, N)
    assert w2.shape == (H1, H2) and w3.shape == (H1, H2)

    # Fused mu|logvar projection weight: one wider GEMM instead of two narrow.
    w23 = jnp.concatenate([w2, w3], axis=1)  # (H1, 2*H2)

    capacity = _vmem_capacity_bytes()
    # Single-buffered resident footprint of the fused small-N kernel (f32).
    resident = 4 * (2 * N * N               # adj + recon
                    + N * F                 # x
                    + 2 * N * H1            # support1 + hidden1
                    + 2 * N * 2 * H2        # support23 + muvar
                    + 2 * N * H2            # mu + logvar
                    + F * H1 + H1 * 2 * H2)  # weights
    if use_fused is None:
        use_fused = resident <= int(0.45 * capacity)

    # ---- small-N fast path: one fused kernel, adj read from HBM once -------
    if use_fused:
        vmem_limit = min(capacity, int(resident * 1.5) + (16 << 20))
        flops = 2 * N * (F * H1 + N * H1 + H1 * 2 * H2 + N * 2 * H2 + N * H2)
        recon, mu, logvar = pl.pallas_call(
            _make_fused_small_kernel(H2),
            out_shape=(jax.ShapeDtypeStruct((N, N), jnp.float32),
                       jax.ShapeDtypeStruct((N, H2), jnp.float32),
                       jax.ShapeDtypeStruct((N, H2), jnp.float32)),
            compiler_params=pltpu.CompilerParams(vmem_limit_bytes=vmem_limit),
            cost_estimate=_cost(flops, resident),
        )(x, adj, w1, w23)
        return recon, mu, logvar

    # ---- tiled path: zero-pad N to a multiple of 128 ------------------------
    N_pad = _round_up(N, 128)
    tm_e = _choose_tile(N_pad, tm)
    tk_e = _choose_tile(N_pad, tk)
    tn_e = _choose_tile(N_pad, tn)

    if N_pad != N:
        x_p = jnp.zeros((N_pad, F), x.dtype).at[:N].set(x)
        adj_p = jnp.zeros((N_pad, N_pad), adj.dtype).at[:N, :N].set(adj)
    else:
        x_p, adj_p = x, adj

    gm = N_pad // tm_e
    gk = N_pad // tk_e
    gn = N_pad // tn_e

    # ---- K1: support23 = relu(adj @ (x @ W1)) @ [W2|W3] ---------------------
    support23 = pl.pallas_call(
        _gc1_fused_kernel,
        out_shape=jax.ShapeDtypeStruct((N_pad, 2 * H2), jnp.float32),
        grid=(gm, gk),
        in_specs=[
            pl.BlockSpec((tm_e, tk_e), lambda i, k: (i, k)),       # adj
            pl.BlockSpec((tk_e, F), lambda i, k: (k, 0)),          # x k-rows
            pl.BlockSpec((F, H1), lambda i, k: (0, 0)),            # W1
            pl.BlockSpec((H1, 2 * H2), lambda i, k: (0, 0)),       # [W2|W3]
        ],
        out_specs=pl.BlockSpec((tm_e, 2 * H2), lambda i, k: (i, 0)),
        scratch_shapes=[pltpu.VMEM((tm_e, H1), jnp.float32)],
        compiler_params=pltpu.CompilerParams(
            dimension_semantics=("parallel", "arbitrary")),
        cost_estimate=_cost(
            2 * gm * N_pad * F * H1 + 2 * N_pad * N_pad * H1
            + 2 * N_pad * H1 * 2 * H2,
            4 * (N_pad * N_pad + gm * N_pad * F + N_pad * 2 * H2
                 + F * H1 + H1 * 2 * H2)),
    )(adj_p, x_p, w1, w23)

    # ---- K2: (mu, logvar) = split(adj @ support23) --------------------------
    mu_p, logvar_p = pl.pallas_call(
        _make_gc2_kernel(H2),
        out_shape=(jax.ShapeDtypeStruct((N_pad, H2), jnp.float32),
                   jax.ShapeDtypeStruct((N_pad, H2), jnp.float32)),
        grid=(gm, gk),
        in_specs=[
            pl.BlockSpec((tm_e, tk_e), lambda i, k: (i, k)),       # adj
            pl.BlockSpec((tk_e, 2 * H2), lambda i, k: (k, 0)),     # support23
        ],
        out_specs=(pl.BlockSpec((tm_e, H2), lambda i, k: (i, 0)),
                   pl.BlockSpec((tm_e, H2), lambda i, k: (i, 0))),
        scratch_shapes=[pltpu.VMEM((tm_e, 2 * H2), jnp.float32)],
        compiler_params=pltpu.CompilerParams(
            dimension_semantics=("parallel", "arbitrary")),
        cost_estimate=_cost(
            2 * N_pad * N_pad * 2 * H2,
            4 * (N_pad * N_pad + gm * N_pad * 2 * H2 + 2 * N_pad * H2)),
    )(adj_p, support23)

    # ---- K3: recon = mu @ mu.T (lane-wide output tiles) ---------------------
    recon_p = pl.pallas_call(
        _recon_kernel,
        out_shape=jax.ShapeDtypeStruct((N_pad, N_pad), jnp.float32),
        grid=(gm, gn),
        in_specs=[
            pl.BlockSpec((tm_e, H2), lambda i, j: (i, 0)),   # mu_i (resident)
            pl.BlockSpec((tn_e, H2), lambda i, j: (j, 0)),   # mu_j
        ],
        out_specs=pl.BlockSpec((tm_e, tn_e), lambda i, j: (i, j)),
        compiler_params=pltpu.CompilerParams(
            dimension_semantics=("parallel", "parallel")),
        cost_estimate=_cost(
            2 * N_pad * N_pad * H2,
            4 * (N_pad * N_pad + (gm + gn) * N_pad * H2)),
    )(mu_p, mu_p)

    if N_pad != N:
        return recon_p[:N, :N], mu_p[:N], logvar_p[:N]
    return recon_p, mu_p, logvar_p


# ---------------------------------------------------------------------------
# reference + self-check
# ---------------------------------------------------------------------------

def _reference(x, adj, w1, w2, w3):
    h1 = jnp.maximum(adj @ (x @ w1), 0.0)
    mu = adj @ (h1 @ w2)
    logvar = adj @ (h1 @ w3)
    return mu @ mu.T, mu, logvar


def _check(got, ref, atol=1e-4, rtol=1e-4):
    for g, r in zip(got, ref):
        assert jnp.allclose(g, r, atol=atol, rtol=rtol)


if __name__ == "__main__":
    # Small deterministic problem: N=256 nodes, F=64 features, H1=32, H2=16.
    N, F, H1, H2 = 256, 64, 32, 16

    key = jax.random.PRNGKey(0)
    kx, kadj, k1, k2, k3 = jax.random.split(key, 5)

    x = jax.random.normal(kx, (N, F), dtype=jnp.float32)

    # Symmetric, normalized adjacency (typical GCN preprocessing).
    raw = (jax.random.uniform(kadj, (N, N)) > 0.9).astype(jnp.float32)
    adj = raw + raw.T + jnp.eye(N, dtype=jnp.float32)
    adj = jnp.clip(adj, 0.0, 1.0)
    deg_inv_sqrt = 1.0 / jnp.sqrt(jnp.maximum(adj.sum(axis=1), 1.0))
    adj = adj * deg_inv_sqrt[:, None] * deg_inv_sqrt[None, :]

    def glorot(k, shape):
        limit = jnp.sqrt(6.0 / (shape[0] + shape[1]))
        return jax.random.uniform(k, shape, jnp.float32, -limit, limit)

    w1 = glorot(k1, (F, H1))
    w2 = glorot(k2, (H1, H2))
    w3 = glorot(k3, (H1, H2))

    ref = _reference(x, adj, w1, w2, w3)

    # 1) default dispatch (small N -> fused resident-adj fast path)
    out_fast = jax.block_until_ready(
        gcn_model_vae_forward(x, adj, w1, w2, w3))
    _check(out_fast, ref)

    # 2) force the tiled pipeline path (exercises K1/K2/K3 with multi-tile grid)
    out_tiled = jax.block_until_ready(
        gcn_model_vae_forward(x, adj, w1, w2, w3, use_fused=False))
    _check(out_tiled, ref)

    # 3) non-tile-multiple N (exercises the zero-padding path of the tiled code)
    N2 = 192
    x2, adj2 = x[:N2], adj[:N2, :N2]
    out_pad = jax.block_until_ready(
        gcn_model_vae_forward(x2, adj2, w1, w2, w3, use_fused=False))
    _check(out_pad, _reference(x2, adj2, w1, w2, w3))

    print("KERNEL_OK")
</pallas_src>

<mosaic_0001>
module attributes {stable_mosaic.version = 11 : i64} {
  func.func @kernel(%arg0: memref<256x64xf32, #tpu.memory_space<vmem>>, %arg1: memref<256x256xf32, #tpu.memory_space<vmem>>, %arg2: memref<64x32xf32, #tpu.memory_space<vmem>>, %arg3: memref<32x32xf32, #tpu.memory_space<vmem>>, %arg4: memref<256x256xf32, #tpu.memory_space<vmem>>, %arg5: memref<256x16xf32, #tpu.memory_space<vmem>>, %arg6: memref<256x16xf32, #tpu.memory_space<vmem>>) attributes {dimension_semantics = [], scalar_prefetch = 0 : i64, scratch_operands = 0 : i64, tpu.core_type = #tpu.core_type<tc>} {
    %c0 = arith.constant 0 : index
    %c0_0 = arith.constant 0 : index
    %0 = vector.load %arg0[%c0, %c0_0] : memref<256x64xf32, #tpu.memory_space<vmem>>, vector<256x64xf32>
    %c0_1 = arith.constant 0 : index
    %c0_2 = arith.constant 0 : index
    %1 = vector.load %arg2[%c0_1, %c0_2] : memref<64x32xf32, #tpu.memory_space<vmem>>, vector<64x32xf32>
    %cst = arith.constant dense<0.000000e+00> : vector<256x32xf32>
    %2 = tpu.matmul %0, %1, %cst {dimension_numbers = #tpu.dot_dimension_numbers<[1], [0], [0], [1], [0, 0, 1, 1], [], []>} : vector<256x64xf32>, vector<64x32xf32>, vector<256x32xf32> -> vector<256x32xf32>
    %c0_3 = arith.constant 0 : index
    %c0_4 = arith.constant 0 : index
    %3 = vector.load %arg1[%c0_3, %c0_4] : memref<256x256xf32, #tpu.memory_space<vmem>>, vector<256x256xf32>
    %cst_5 = arith.constant dense<0.000000e+00> : vector<256x32xf32>
    %4 = tpu.matmul %3, %2, %cst_5 {dimension_numbers = #tpu.dot_dimension_numbers<[1], [0], [0], [1], [0, 0, 1, 1], [], []>} : vector<256x256xf32>, vector<256x32xf32>, vector<256x32xf32> -> vector<256x32xf32>
    %cst_6 = arith.constant 0.000000e+00 : f32
    %5 = vector.broadcast %cst_6 : f32 to vector<256x32xf32>
    %6 = arith.maximumf %4, %5 : vector<256x32xf32>
    %c0_7 = arith.constant 0 : index
    %c0_8 = arith.constant 0 : index
    %7 = vector.load %arg3[%c0_7, %c0_8] : memref<32x32xf32, #tpu.memory_space<vmem>>, vector<32x32xf32>
    %cst_9 = arith.constant dense<0.000000e+00> : vector<256x32xf32>
    %8 = tpu.matmul %6, %7, %cst_9 {dimension_numbers = #tpu.dot_dimension_numbers<[1], [0], [0], [1], [0, 0, 1, 1], [], []>} : vector<256x32xf32>, vector<32x32xf32>, vector<256x32xf32> -> vector<256x32xf32>
    %c0_10 = arith.constant 0 : index
    %c0_11 = arith.constant 0 : index
    %9 = vector.load %arg1[%c0_10, %c0_11] : memref<256x256xf32, #tpu.memory_space<vmem>>, vector<256x256xf32>
    %cst_12 = arith.constant dense<0.000000e+00> : vector<256x32xf32>
    %10 = tpu.matmul %9, %8, %cst_12 {dimension_numbers = #tpu.dot_dimension_numbers<[1], [0], [0], [1], [0, 0, 1, 1], [], []>} : vector<256x256xf32>, vector<256x32xf32>, vector<256x32xf32> -> vector<256x32xf32>
    %11 = vector.extract_strided_slice %10 {offsets = [0, 0], sizes = [256, 16], strides = [1, 1]} : vector<256x32xf32> to vector<256x16xf32>
    %c0_13 = arith.constant 0 : index
    %c0_14 = arith.constant 0 : index
    %12 = vector.load %arg5[%c0_13, %c0_14] : memref<256x16xf32, #tpu.memory_space<vmem>>, vector<256x16xf32>
    tpu.vector_store %arg5[%c0_13, %c0_14], %11 {strides = array<i32>} : memref<256x16xf32, #tpu.memory_space<vmem>>, vector<256x16xf32>,
    %13 = vector.extract_strided_slice %10 {offsets = [0, 16], sizes = [256, 16], strides = [1, 1]} : vector<256x32xf32> to vector<256x16xf32>
    %c0_15 = arith.constant 0 : index
    %c0_16 = arith.constant 0 : index
    %14 = vector.load %arg6[%c0_15, %c0_16] : memref<256x16xf32, #tpu.memory_space<vmem>>, vector<256x16xf32>
    tpu.vector_store %arg6[%c0_15, %c0_16], %13 {strides = array<i32>} : memref<256x16xf32, #tpu.memory_space<vmem>>, vector<256x16xf32>,
    %cst_17 = arith.constant dense<0.000000e+00> : vector<256x256xf32>
    %15 = tpu.matmul %11, %11, %cst_17 {dimension_numbers = #tpu.dot_dimension_numbers<[1], [1], [0], [0], [0, 0, 1, 0], [], []>} : vector<256x16xf32>, vector<256x16xf32>, vector<256x256xf32> -> vector<256x256xf32>
    %c0_18 = arith.constant 0 : index
    %c0_19 = arith.constant 0 : index
    %16 = vector.load %arg4[%c0_18, %c0_19] : memref<256x256xf32, #tpu.memory_space<vmem>>, vector<256x256xf32>
    tpu.vector_store %arg4[%c0_18, %c0_19], %15 {strides = array<i32>} : memref<256x256xf32, #tpu.memory_space<vmem>>, vector<256x256xf32>,
    return
  }
}

</mosaic_0001>

<llo_original>
// kernel: tpu_custom_call.1
$region0: #{tpu_custom_call.1}
  #allocation0 [shape = 'u32[]', space=smem, size = 0x4, offset = 0x4, fixed_abs, tag = 'smem constant byte address 0x4 - core index']
  #allocation1 [shape = 'u32[72,128]{1,0:T(1,128)}', space=vmem, size = 0x9000, scoped, tag = 'internal scratch']
  %s0 = inlined_call_operand.vmem [shape: f32[256,64], index: 0, kind: input, shape index: {}]
  %s1 = inlined_call_operand.hbm [shape: f32[256,256], index: 1, kind: input, shape index: {}]
  %s2 = inlined_call_operand.vmem [shape: f32[64,32], index: 2, kind: input, shape index: {}]
  %s3 = inlined_call_operand.vmem [shape: f32[32,32], index: 3, kind: input, shape index: {}]
  %s4 = inlined_call_operand.hbm [shape: f32[256,256], index: 4, kind: output, shape index: {0}]
  %s5 = inlined_call_operand.vmem [shape: f32[256,16], index: 5, kind: output, shape index: {1}]
  %s6 = inlined_call_operand.vmem [shape: f32[256,16], index: 6, kind: output, shape index: {2}]
  %7 = xla_tuple %s4, %s5, %s6
  %s8 = sld [smem:[#allocation0]]
  $region46: #{tpu_custom_call.1} parent=0
    _
  %s10 = ssub.s32 1, %s8
  %s11 = scalar_select 0, %s10, %s8
  $region1: #{tpu_custom_call.1} parent=0
    #allocation2 [shape = 'u8[262144]{0}', space=vmem, size = 0x40000, scoped, tag = 'input window, operand 1, single buffered']
    #allocation3 [shape = 's32[1]{0}', space=sflag, size = 0x4, scoped, tag = 'scoped memory for tpu_custom_call.1']
    #allocation4 [shape = 's32[1]{0}', space=sflag, size = 0x4, scoped, tag = 'scoped memory for tpu_custom_call.1']
    #allocation5 [shape = 'u8[262144]{0}', space=vmem, size = 0x40000, scoped, tag = 'output window, operand 0, single buffered']
    %12 = vsyncpa [#allocation3], 0
    %13 = vsyncpa [#allocation4], 0
    // Predicated region
    $region2: #{tpu_custom_call.1} parent=1 // pred_check
      _
    $region3: #{tpu_custom_call.1} parent=1 // pred_check_branch
      %15 = sbr.rel (0) target = $region5
    $region4: #{tpu_custom_call.1} parent=1 // pred_region
      _
    $region5: #{tpu_custom_call.1} parent=1 // pred_fallthru
      _
    // Predicated region
    $region6: #{tpu_custom_call.1} parent=1 // pred_check
      _
    $region7: #{tpu_custom_call.1} parent=1 // pred_check_branch
      %17 = sbr.rel (0) target = $region9
    $region8: #{tpu_custom_call.1} parent=1 // pred_region
      %19 = vsyncadd [#allocation3], 0
      %s20 = sshll.u32 %s1, 4
      %s21 = int_to_ptr.hbm [resolvable:$true] %s20
      %s22 = sshll.u32 [#allocation2], 4
      %s23 = int_to_ptr.vmem [resolvable:$true] %s22
      %28 = dma.hbm_to_vmem [thread:$0]  %s21, 8192, %s23, [#allocation3], 256, 256, 16
    $region9: #{tpu_custom_call.1} parent=1 // pred_fallthru
      _
    // Predicated region
    $region10: #{tpu_custom_call.1} parent=1 // pred_check
      _
    $region11: #{tpu_custom_call.1} parent=1 // pred_check_branch
      %30 = sbr.rel (0) target = $region13
    $region12: #{tpu_custom_call.1} parent=1 // pred_region
      _
    $region13: #{tpu_custom_call.1} parent=1 // pred_fallthru
      _
    // Predicated region
    $region14: #{tpu_custom_call.1} parent=1 // pred_check
      _
    $region15: #{tpu_custom_call.1} parent=1 // pred_check_branch
      %32 = sbr.rel (0) target = $region17
    $region16: #{tpu_custom_call.1} parent=1 // pred_region
      _
    $region17: #{tpu_custom_call.1} parent=1 // pred_fallthru
      _
    // Predicated region
    $region18: #{tpu_custom_call.1} parent=1 // pred_check
      _
    $region19: #{tpu_custom_call.1} parent=1 // pred_check_branch
      %34 = sbr.rel (0) target = $region21
    $region20: #{tpu_custom_call.1} parent=1 // pred_region
      %36 = dma.done [#allocation3], 8192
    $region21: #{tpu_custom_call.1} parent=1 // pred_fallthru
      _
    %v37 = vld [vmem:[%s0] sm:$0xff]
    %v38 = vld [vmem:[%s0 + $0x8] sm:$0xff]
    %v39 = vld [vmem:[%s0 + $0x10] sm:$0xff]
    %v40 = vld [vmem:[%s0 + $0x18] sm:$0xff]
    %v41 = vld [vmem:[%s0 + $0x20] sm:$0xff]
    %v42 = vld [vmem:[%s0 + $0x28] sm:$0xff]
    %v43 = vld [vmem:[%s0 + $0x30] sm:$0xff]
    %v44 = vld [vmem:[%s0 + $0x38] sm:$0xff]
    %v45 = vld [vmem:[%s0 + $0x40] sm:$0xff]
    %v46 = vld [vmem:[%s0 + $0x48] sm:$0xff]
    %v47 = vld [vmem:[%s0 + $0x50] sm:$0xff]
    %v48 = vld [vmem:[%s0 + $0x58] sm:$0xff]
    %v49 = vld [vmem:[%s0 + $0x60] sm:$0xff]
    %v50 = vld [vmem:[%s0 + $0x68] sm:$0xff]
    %v51 = vld [vmem:[%s0 + $0x70] sm:$0xff]
    %v52 = vld [vmem:[%s0 + $0x78] sm:$0xff]
    %v53 = vld [vmem:[%s0 + $0x80] sm:$0xff]
    %v54 = vld [vmem:[%s0 + $0x88] sm:$0xff]
    %v55 = vld [vmem:[%s0 + $0x90] sm:$0xff]
    %v56 = vld [vmem:[%s0 + $0x98] sm:$0xff]
    %v57 = vld [vmem:[%s0 + $0xa0] sm:$0xff]
    %v58 = vld [vmem:[%s0 + $0xa8] sm:$0xff]
    %v59 = vld [vmem:[%s0 + $0xb0] sm:$0xff]
    %v60 = vld [vmem:[%s0 + $0xb8] sm:$0xff]
    %v61 = vld [vmem:[%s0 + $0xc0] sm:$0xff]
    %v62 = vld [vmem:[%s0 + $0xc8] sm:$0xff]
    %v63 = vld [vmem:[%s0 + $0xd0] sm:$0xff]
    %v64 = vld [vmem:[%s0 + $0xd8] sm:$0xff]
    %v65 = vld [vmem:[%s0 + $0xe0] sm:$0xff]
    %v66 = vld [vmem:[%s0 + $0xe8] sm:$0xff]
    %v67 = vld [vmem:[%s0 + $0xf0] sm:$0xff]
    %v68 = vld [vmem:[%s0 + $0xf8] sm:$0xff]
    %v69 = vld [vmem:[%s2] sm:$0xff]
    %v70 = vld [vmem:[%s2 + $0x8] sm:$0xff]
    %v71 = vld [vmem:[%s2 + $0x10] sm:$0xff]
    %v72 = vld [vmem:[%s2 + $0x18] sm:$0xff]
    %v73 = vld [vmem:[%s2 + $0x20] sm:$0xff]
    %v74 = vld [vmem:[%s2 + $0x28] sm:$0xff]
    %v75 = vld [vmem:[%s2 + $0x30] sm:$0xff]
    %v76 = vld [vmem:[%s2 + $0x38] sm:$0xff]
    %vm77 = vcmask 523264
    %v79 = vsel %vm77, %v37, 0
    %v82 = vsel %vm77, %v38, 0
    %v85 = vsel %vm77, %v39, 0
    %v88 = vsel %vm77, %v40, 0
    %v91 = vsel %vm77, %v41, 0
    %v94 = vsel %vm77, %v42, 0
    %v97 = vsel %vm77, %v43, 0
    %v100 = vsel %vm77, %v44, 0
    %v103 = vsel %vm77, %v45, 0
    %v106 = vsel %vm77, %v46, 0
    %v109 = vsel %vm77, %v47, 0
    %v112 = vsel %vm77, %v48, 0
    %v115 = vsel %vm77, %v49, 0
    %v118 = vsel %vm77, %v50, 0
    %v121 = vsel %vm77, %v51, 0
    %v124 = vsel %vm77, %v52, 0
    %v127 = vsel %vm77, %v53, 0
    %v130 = vsel %vm77, %v54, 0
    %v133 = vsel %vm77, %v55, 0
    %v136 = vsel %vm77, %v56, 0
    %v139 = vsel %vm77, %v57, 0
    %v142 = vsel %vm77, %v58, 0
    %v145 = vsel %vm77, %v59, 0
    %v148 = vsel %vm77, %v60, 0
    %v151 = vsel %vm77, %v61, 0
    %v154 = vsel %vm77, %v62, 0
    %v157 = vsel %vm77, %v63, 0
    %v160 = vsel %vm77, %v64, 0
    %v163 = vsel %vm77, %v65, 0
    %v166 = vsel %vm77, %v66, 0
    %v169 = vsel %vm77, %v67, 0
    %v172 = vsel %vm77, %v68, 0
    %174 = vmatpush.msra.mxu0 0.0
    %175 = vmatpush.msra.mxu0 0.0
    %176 = vmatpush.msra.mxu0 0.0
    %177 = vmatpush.msra.mxu0 0.0
    %178 = vmatpush.msra.mxu0 0.0
    %179 = vmatpush.msra.mxu0 0.0
    %180 = vmatpush.msra.mxu0 0.0
    %181 = vmatpush.msra.mxu0 0.0
    %182 = vmatpush.msra.mxu0 %v76
    %183 = vmatpush.msra.mxu0 %v75
    %184 = vmatpush.msra.mxu0 %v74
    %185 = vmatpush.msra.mxu0 %v73
    %186 = vmatpush.msra.mxu0 %v72
    %187 = vmatpush.msra.mxu0 %v71
    %188 = vmatpush.msra.mxu0 %v70
    %189 = vmatpush.msra.mxu0 %v69
    %190 = vmatmul.f32.gmra.mxu0 %v79
    %v191 = vpop.f32.mrf.mxu0
    %v192 = vadd.f32 0.0, %v191
    %193 = vmatmul.f32.gmra.mxu0 %v82
    %v194 = vpop.f32.mrf.mxu0
    %v195 = vadd.f32 0.0, %v194
    %196 = vmatmul.f32.gmra.mxu0 %v85
    %v197 = vpop.f32.mrf.mxu0
    %v198 = vadd.f32 0.0, %v197
    %199 = vmatmul.f32.gmra.mxu0 %v88
    %v200 = vpop.f32.mrf.mxu0
    %v201 = vadd.f32 0.0, %v200
    %202 = vmatmul.f32.gmra.mxu0 %v91
    %v203 = vpop.f32.mrf.mxu0
    %v204 = vadd.f32 0.0, %v203
    %205 = vmatmul.f32.gmra.mxu0 %v94
    %v206 = vpop.f32.mrf.mxu0
    %v207 = vadd.f32 0.0, %v206
    %208 = vmatmul.f32.gmra.mxu0 %v97
    %v209 = vpop.f32.mrf.mxu0
    %v210 = vadd.f32 0.0, %v209
    %211 = vmatmul.f32.gmra.mxu0 %v100
    %v212 = vpop.f32.mrf.mxu0
    %v213 = vadd.f32 0.0, %v212
    %214 = vmatmul.f32.gmra.mxu0 %v103
    %v215 = vpop.f32.mrf.mxu0
    %v216 = vadd.f32 0.0, %v215
    %217 = vmatmul.f32.gmra.mxu0 %v106
    %v218 = vpop.f32.mrf.mxu0
    %v219 = vadd.f32 0.0, %v218
    %220 = vmatmul.f32.gmra.mxu0 %v109
    %v221 = vpop.f32.mrf.mxu0
    %v222 = vadd.f32 0.0, %v221
    %223 = vmatmul.f32.gmra.mxu0 %v112
    %v224 = vpop.f32.mrf.mxu0
    %v225 = vadd.f32 0.0, %v224
    %226 = vmatmul.f32.gmra.mxu0 %v115
    %v227 = vpop.f32.mrf.mxu0
    %v228 = vadd.f32 0.0, %v227
    %229 = vmatmul.f32.gmra.mxu0 %v118
    %v230 = vpop.f32.mrf.mxu0
    %v231 = vadd.f32 0.0, %v230
    %232 = vmatmul.f32.gmra.mxu0 %v121
    %v233 = vpop.f32.mrf.mxu0
    %v234 = vadd.f32 0.0, %v233
    %235 = vmatmul.f32.gmra.mxu0 %v124
    %v236 = vpop.f32.mrf.mxu0
    %v237 = vadd.f32 0.0, %v236
    %238 = vmatmul.f32.gmra.mxu0 %v127
    %v239 = vpop.f32.mrf.mxu0
    %v240 = vadd.f32 0.0, %v239
    %241 = vmatmul.f32.gmra.mxu0 %v130
    %v242 = vpop.f32.mrf.mxu0
    %v243 = vadd.f32 0.0, %v242
    %244 = vmatmul.f32.gmra.mxu0 %v133
    %v245 = vpop.f32.mrf.mxu0
    %v246 = vadd.f32 0.0, %v245
    %247 = vmatmul.f32.gmra.mxu0 %v136
    %v248 = vpop.f32.mrf.mxu0
    %v249 = vadd.f32 0.0, %v248
    %250 = vmatmul.f32.gmra.mxu0 %v139
    %v251 = vpop.f32.mrf.mxu0
    %v252 = vadd.f32 0.0, %v251
    %253 = vmatmul.f32.gmra.mxu0 %v142
    %v254 = vpop.f32.mrf.mxu0
    %v255 = vadd.f32 0.0, %v254
    %256 = vmatmul.f32.gmra.mxu0 %v145
    %v257 = vpop.f32.mrf.mxu0
    %v258 = vadd.f32 0.0, %v257
    %259 = vmatmul.f32.gmra.mxu0 %v148
    %v260 = vpop.f32.mrf.mxu0
    %v261 = vadd.f32 0.0, %v260
    %262 = vmatmul.f32.gmra.mxu0 %v151
    %v263 = vpop.f32.mrf.mxu0
    %v264 = vadd.f32 0.0, %v263
    %265 = vmatmul.f32.gmra.mxu0 %v154
    %v266 = vpop.f32.mrf.mxu0
    %v267 = vadd.f32 0.0, %v266
    %268 = vmatmul.f32.gmra.mxu0 %v157
    %v269 = vpop.f32.mrf.mxu0
    %v270 = vadd.f32 0.0, %v269
    %271 = vmatmul.f32.gmra.mxu0 %v160
    %v272 = vpop.f32.mrf.mxu0
    %v273 = vadd.f32 0.0, %v272
    %274 = vmatmul.f32.gmra.mxu0 %v163
    %v275 = vpop.f32.mrf.mxu0
    %v276 = vadd.f32 0.0, %v275
    %277 = vmatmul.f32.gmra.mxu0 %v166
    %v278 = vpop.f32.mrf.mxu0
    %v279 = vadd.f32 0.0, %v278
    %280 = vmatmul.f32.gmra.mxu0 %v169
    %v281 = vpop.f32.mrf.mxu0
    %v282 = vadd.f32 0.0, %v281
    %283 = vmatmul.f32.gmra.mxu0 %v172
    %v284 = vpop.f32.mrf.mxu0
    %v285 = vadd.f32 0.0, %v284
    %286 = vdwg.mxu0
    %v287 = vld [vmem:[#allocation2] sm:$0xff]
    %v288 = vld [vmem:[#allocation2 + $0x8] sm:$0xff]
    %v289 = vld [vmem:[#allocation2 + $0x10] sm:$0xff]
    %v290 = vld [vmem:[#allocation2 + $0x18] sm:$0xff]
    %v291 = vld [vmem:[#allocation2 + $0x20] sm:$0xff]
    %v292 = vld [vmem:[#allocation2 + $0x28] sm:$0xff]
    %v293 = vld [vmem:[#allocation2 + $0x30] sm:$0xff]
    %v294 = vld [vmem:[#allocation2 + $0x38] sm:$0xff]
    %v295 = vld [vmem:[#allocation2 + $0x40] sm:$0xff]
    %v296 = vld [vmem:[#allocation2 + $0x48] sm:$0xff]
    %v297 = vld [vmem:[#allocation2 + $0x50] sm:$0xff]
    %v298 = vld [vmem:[#allocation2 + $0x58] sm:$0xff]
    %v299 = vld [vmem:[#allocation2 + $0x60] sm:$0xff]
    %v300 = vld [vmem:[#allocation2 + $0x68] sm:$0xff]
    %v301 = vld [vmem:[#allocation2 + $0x70] sm:$0xff]
    %v302 = vld [vmem:[#allocation2 + $0x78] sm:$0xff]
    %v303 = vld [vmem:[#allocation2 + $0x80] sm:$0xff]
    %v304 = vld [vmem:[#allocation2 + $0x88] sm:$0xff]
    %v305 = vld [vmem:[#allocation2 + $0x90] sm:$0xff]
    %v306 = vld [vmem:[#allocation2 + $0x98] sm:$0xff]
    %v307 = vld [vmem:[#allocation2 + $0xa0] sm:$0xff]
    %v308 = vld [vmem:[#allocation2 + $0xa8] sm:$0xff]
    %v309 = vld [vmem:[#allocation2 + $0xb0] sm:$0xff]
    %v310 = vld [vmem:[#allocation2 + $0xb8] sm:$0xff]
    %v311 = vld [vmem:[#allocation2 + $0xc0] sm:$0xff]
    %v312 = vld [vmem:[#allocation2 + $0xc8] sm:$0xff]
    %v313 = vld [vmem:[#allocation2 + $0xd0] sm:$0xff]
    %v314 = vld [vmem:[#allocation2 + $0xd8] sm:$0xff]
    %v315 = vld [vmem:[#allocation2 + $0xe0] sm:$0xff]
    %v316 = vld [vmem:[#allocation2 + $0xe8] sm:$0xff]
    %v317 = vld [vmem:[#allocation2 + $0xf0] sm:$0xff]
    %v318 = vld [vmem:[#allocation2 + $0xf8] sm:$0xff]
    %v319 = vld [vmem:[#allocation2 + $0x100] sm:$0xff]
    %v320 = vld [vmem:[#allocation2 + $0x108] sm:$0xff]
    %v321 = vld [vmem:[#allocation2 + $0x110] sm:$0xff]
    %v322 = vld [vmem:[#allocation2 + $0x118] sm:$0xff]
    %v323 = vld [vmem:[#allocation2 + $0x120] sm:$0xff]
    %v324 = vld [vmem:[#allocation2 + $0x128] sm:$0xff]
    %v325 = vld [vmem:[#allocation2 + $0x130] sm:$0xff]
    %v326 = vld [vmem:[#allocation2 + $0x138] sm:$0xff]
    %v327 = vld [vmem:[#allocation2 + $0x140] sm:$0xff]
    %v328 = vld [vmem:[#allocation2 + $0x148] sm:$0xff]
    %v329 = vld [vmem:[#allocation2 + $0x150] sm:$0xff]
    %v330 = vld [vmem:[#allocation2 + $0x158] sm:$0xff]
    %v331 = vld [vmem:[#allocation2 + $0x160] sm:$0xff]
    %v332 = vld [vmem:[#allocation2 + $0x168] sm:$0xff]
    %v333 = vld [vmem:[#allocation2 + $0x170] sm:$0xff]
    %v334 = vld [vmem:[#allocation2 + $0x178] sm:$0xff]
    %v335 = vld [vmem:[#allocation2 + $0x180] sm:$0xff]
    %v336 = vld [vmem:[#allocation2 + $0x188] sm:$0xff]
    %v337 = vld [vmem:[#allocation2 + $0x190] sm:$0xff]
    %v338 = vld [vmem:[#allocation2 + $0x198] sm:$0xff]
    %v339 = vld [vmem:[#allocation2 + $0x1a0] sm:$0xff]
    %v340 = vld [vmem:[#allocation2 + $0x1a8] sm:$0xff]
    %v341 = vld [vmem:[#allocation2 + $0x1b0] sm:$0xff]
    %v342 = vld [vmem:[#allocation2 + $0x1b8] sm:$0xff]
    %v343 = vld [vmem:[#allocation2 + $0x1c0] sm:$0xff]
    %v344 = vld [vmem:[#allocation2 + $0x1c8] sm:$0xff]
    %v345 = vld [vmem:[#allocation2 + $0x1d0] sm:$0xff]
    %v346 = vld [vmem:[#allocation2 + $0x1d8] sm:$0xff]
    %v347 = vld [vmem:[#allocation2 + $0x1e0] sm:$0xff]
    %v348 = vld [vmem:[#allocation2 + $0x1e8] sm:$0xff]
    %v349 = vld [vmem:[#allocation2 + $0x1f0] sm:$0xff]
    %v350 = vld [vmem:[#allocation2 + $0x1f8] sm:$0xff]
    %351 = vmatpush.msra.mxu0 %v237
    %352 = vmatpush.msra.mxu0 %v234
    %353 = vmatpush.msra.mxu0 %v231
    %354 = vmatpush.msra.mxu0 %v228
    %355 = vmatpush.msra.mxu0 %v225
    %356 = vmatpush.msra.mxu0 %v222
    %357 = vmatpush.msra.mxu0 %v219
    %358 = vmatpush.msra.mxu0 %v216
    %359 = vmatpush.msra.mxu0 %v213
    %360 = vmatpush.msra.mxu0 %v210
    %361 = vmatpush.msra.mxu0 %v207
    %362 = vmatpush.msra.mxu0 %v204
    %363 = vmatpush.msra.mxu0 %v201
    %364 = vmatpush.msra.mxu0 %v198
    %365 = vmatpush.msra.mxu0 %v195
    %366 = vmatpush.msra.mxu0 %v192
    %367 = vmatmul.f32.gmra.mxu0 %v287
    %v368 = vpop.f32.mrf.mxu0
    %v369 = vadd.f32 0.0, %v368
    %370 = vmatmul.f32.gmra.mxu0 %v289
    %v371 = vpop.f32.mrf.mxu0
    %v372 = vadd.f32 0.0, %v371
    %373 = vmatmul.f32.gmra.mxu0 %v291
    %v374 = vpop.f32.mrf.mxu0
    %v375 = vadd.f32 0.0, %v374
    %376 = vmatmul.f32.gmra.mxu0 %v293
    %v377 = vpop.f32.mrf.mxu0
    %v378 = vadd.f32 0.0, %v377
    %379 = vmatmul.f32.gmra.mxu0 %v295
    %v380 = vpop.f32.mrf.mxu0
    %v381 = vadd.f32 0.0, %v380
    %382 = vmatmul.f32.gmra.mxu0 %v297
    %v383 = vpop.f32.mrf.mxu0
    %v384 = vadd.f32 0.0, %v383
    %385 = vmatmul.f32.gmra.mxu0 %v299
    %v386 = vpop.f32.mrf.mxu0
    %v387 = vadd.f32 0.0, %v386
    %388 = vmatmul.f32.gmra.mxu0 %v301
    %v389 = vpop.f32.mrf.mxu0
    %v390 = vadd.f32 0.0, %v389
    %391 = vmatmul.f32.gmra.mxu0 %v303
    %v392 = vpop.f32.mrf.mxu0
    %v393 = vadd.f32 0.0, %v392
    %394 = vmatmul.f32.gmra.mxu0 %v305
    %v395 = vpop.f32.mrf.mxu0
    %v396 = vadd.f32 0.0, %v395
    %397 = vmatmul.f32.gmra.mxu0 %v307
    %v398 = vpop.f32.mrf.mxu0
    %v399 = vadd.f32 0.0, %v398
    %400 = vmatmul.f32.gmra.mxu0 %v309
    %v401 = vpop.f32.mrf.mxu0
    %v402 = vadd.f32 0.0, %v401
    %403 = vmatmul.f32.gmra.mxu0 %v311
    %v404 = vpop.f32.mrf.mxu0
    %v405 = vadd.f32 0.0, %v404
    %406 = vmatmul.f32.gmra.mxu0 %v313
    %v407 = vpop.f32.mrf.mxu0
    %v408 = vadd.f32 0.0, %v407
    %409 = vmatmul.f32.gmra.mxu0 %v315
    %v410 = vpop.f32.mrf.mxu0
    %v411 = vadd.f32 0.0, %v410
    %412 = vmatmul.f32.gmra.mxu0 %v317
    %v413 = vpop.f32.mrf.mxu0
    %v414 = vadd.f32 0.0, %v413
    %415 = vmatmul.f32.gmra.mxu0 %v319
    %v416 = vpop.f32.mrf.mxu0
    %v417 = vadd.f32 0.0, %v416
    %418 = vmatmul.f32.gmra.mxu0 %v321
    %v419 = vpop.f32.mrf.mxu0
    %v420 = vadd.f32 0.0, %v419
    %421 = vmatmul.f32.gmra.mxu0 %v323
    %v422 = vpop.f32.mrf.mxu0
    %v423 = vadd.f32 0.0, %v422
    %424 = vmatmul.f32.gmra.mxu0 %v325
    %v425 = vpop.f32.mrf.mxu0
    %v426 = vadd.f32 0.0, %v425
    %427 = vmatmul.f32.gmra.mxu0 %v327
    %v428 = vpop.f32.mrf.mxu0
    %v429 = vadd.f32 0.0, %v428
    %430 = vmatmul.f32.gmra.mxu0 %v329
    %v431 = vpop.f32.mrf.mxu0
    %v432 = vadd.f32 0.0, %v431
    %433 = vmatmul.f32.gmra.mxu0 %v331
    %v434 = vpop.f32.mrf.mxu0
    %v435 = vadd.f32 0.0, %v434
    %436 = vmatmul.f32.gmra.mxu0 %v333
    %v437 = vpop.f32.mrf.mxu0
    %v438 = vadd.f32 0.0, %v437
    %439 = vmatmul.f32.gmra.mxu0 %v335
    %v440 = vpop.f32.mrf.mxu0
    %v441 = vadd.f32 0.0, %v440
    %442 = vmatmul.f32.gmra.mxu0 %v337
    %v443 = vpop.f32.mrf.mxu0
    %v444 = vadd.f32 0.0, %v443
    %445 = vmatmul.f32.gmra.mxu0 %v339
    %v446 = vpop.f32.mrf.mxu0
    %v447 = vadd.f32 0.0, %v446
    %448 = vmatmul.f32.gmra.mxu0 %v341
    %v449 = vpop.f32.mrf.mxu0
    %v450 = vadd.f32 0.0, %v449
    %451 = vmatmul.f32.gmra.mxu0 %v343
    %v452 = vpop.f32.mrf.mxu0
    %v453 = vadd.f32 0.0, %v452
    %454 = vmatmul.f32.gmra.mxu0 %v345
    %v455 = vpop.f32.mrf.mxu0
    %v456 = vadd.f32 0.0, %v455
    %457 = vmatmul.f32.gmra.mxu0 %v347
    %v458 = vpop.f32.mrf.mxu0
    %v459 = vadd.f32 0.0, %v458
    %460 = vmatmul.f32.gmra.mxu0 %v349
    %v461 = vpop.f32.mrf.mxu0
    %v462 = vadd.f32 0.0, %v461
    %463 = vdwg.mxu0
    %464 = vmatpush.msra.mxu0 %v285
    %465 = vmatpush.msra.mxu0 %v282
    %466 = vmatpush.msra.mxu0 %v279
    %467 = vmatpush.msra.mxu0 %v276
    %468 = vmatpush.msra.mxu0 %v273
    %469 = vmatpush.msra.mxu0 %v270
    %470 = vmatpush.msra.mxu0 %v267
    %471 = vmatpush.msra.mxu0 %v264
    %472 = vmatpush.msra.mxu0 %v261
    %473 = vmatpush.msra.mxu0 %v258
    %474 = vmatpush.msra.mxu0 %v255
    %475 = vmatpush.msra.mxu0 %v252
    %476 = vmatpush.msra.mxu0 %v249
    %477 = vmatpush.msra.mxu0 %v246
    %478 = vmatpush.msra.mxu0 %v243
    %479 = vmatpush.msra.mxu0 %v240
    %480 = vmatmul.f32.gmra.mxu0 %v288
    %v481 = vpop.f32.mrf.mxu0
    %v482 = vadd.f32 %v369, %v481
    %483 = vmatmul.f32.gmra.mxu0 %v290
    %v484 = vpop.f32.mrf.mxu0
    %v485 = vadd.f32 %v372, %v484
    %486 = vmatmul.f32.gmra.mxu0 %v292
    %v487 = vpop.f32.mrf.mxu0
    %v488 = vadd.f32 %v375, %v487
    %489 = vmatmul.f32.gmra.mxu0 %v294
    %v490 = vpop.f32.mrf.mxu0
    %v491 = vadd.f32 %v378, %v490
    %492 = vmatmul.f32.gmra.mxu0 %v296
    %v493 = vpop.f32.mrf.mxu0
    %v494 = vadd.f32 %v381, %v493
    %495 = vmatmul.f32.gmra.mxu0 %v298
    %v496 = vpop.f32.mrf.mxu0
    %v497 = vadd.f32 %v384, %v496
    %498 = vmatmul.f32.gmra.mxu0 %v300
    %v499 = vpop.f32.mrf.mxu0
    %v500 = vadd.f32 %v387, %v499
    %501 = vmatmul.f32.gmra.mxu0 %v302
    %v502 = vpop.f32.mrf.mxu0
    %v503 = vadd.f32 %v390, %v502
    %504 = vmatmul.f32.gmra.mxu0 %v304
    %v505 = vpop.f32.mrf.mxu0
    %v506 = vadd.f32 %v393, %v505
    %507 = vmatmul.f32.gmra.mxu0 %v306
    %v508 = vpop.f32.mrf.mxu0
    %v509 = vadd.f32 %v396, %v508
    %510 = vmatmul.f32.gmra.mxu0 %v308
    %v511 = vpop.f32.mrf.mxu0
    %v512 = vadd.f32 %v399, %v511
    %513 = vmatmul.f32.gmra.mxu0 %v310
    %v514 = vpop.f32.mrf.mxu0
    %v515 = vadd.f32 %v402, %v514
    %516 = vmatmul.f32.gmra.mxu0 %v312
    %v517 = vpop.f32.mrf.mxu0
    %v518 = vadd.f32 %v405, %v517
    %519 = vmatmul.f32.gmra.mxu0 %v314
    %v520 = vpop.f32.mrf.mxu0
    %v521 = vadd.f32 %v408, %v520
    %522 = vmatmul.f32.gmra.mxu0 %v316
    %v523 = vpop.f32.mrf.mxu0
    %v524 = vadd.f32 %v411, %v523
    %525 = vmatmul.f32.gmra.mxu0 %v318
    %v526 = vpop.f32.mrf.mxu0
    %v527 = vadd.f32 %v414, %v526
    %528 = vmatmul.f32.gmra.mxu0 %v320
    %v529 = vpop.f32.mrf.mxu0
    %v530 = vadd.f32 %v417, %v529
    %531 = vmatmul.f32.gmra.mxu0 %v322
    %v532 = vpop.f32.mrf.mxu0
    %v533 = vadd.f32 %v420, %v532
    %534 = vmatmul.f32.gmra.mxu0 %v324
    %v535 = vpop.f32.mrf.mxu0
    %v536 = vadd.f32 %v423, %v535
    %537 = vmatmul.f32.gmra.mxu0 %v326
    %v538 = vpop.f32.mrf.mxu0
    %v539 = vadd.f32 %v426, %v538
    %540 = vmatmul.f32.gmra.mxu0 %v328
    %v541 = vpop.f32.mrf.mxu0
    %v542 = vadd.f32 %v429, %v541
    %543 = vmatmul.f32.gmra.mxu0 %v330
    %v544 = vpop.f32.mrf.mxu0
    %v545 = vadd.f32 %v432, %v544
    %546 = vmatmul.f32.gmra.mxu0 %v332
    %v547 = vpop.f32.mrf.mxu0
    %v548 = vadd.f32 %v435, %v547
    %549 = vmatmul.f32.gmra.mxu0 %v334
    %v550 = vpop.f32.mrf.mxu0
    %v551 = vadd.f32 %v438, %v550
    %552 = vmatmul.f32.gmra.mxu0 %v336
    %v553 = vpop.f32.mrf.mxu0
    %v554 = vadd.f32 %v441, %v553
    %555 = vmatmul.f32.gmra.mxu0 %v338
    %v556 = vpop.f32.mrf.mxu0
    %v557 = vadd.f32 %v444, %v556
    %558 = vmatmul.f32.gmra.mxu0 %v340
    %v559 = vpop.f32.mrf.mxu0
    %v560 = vadd.f32 %v447, %v559
    %561 = vmatmul.f32.gmra.mxu0 %v342
    %v562 = vpop.f32.mrf.mxu0
    %v563 = vadd.f32 %v450, %v562
    %564 = vmatmul.f32.gmra.mxu0 %v344
    %v565 = vpop.f32.mrf.mxu0
    %v566 = vadd.f32 %v453, %v565
    %567 = vmatmul.f32.gmra.mxu0 %v346
    %v568 = vpop.f32.mrf.mxu0
    %v569 = vadd.f32 %v456, %v568
    %570 = vmatmul.f32.gmra.mxu0 %v348
    %v571 = vpop.f32.mrf.mxu0
    %v572 = vadd.f32 %v459, %v571
    %573 = vmatmul.f32.gmra.mxu0 %v350
    %v574 = vpop.f32.mrf.mxu0
    %v575 = vadd.f32 %v462, %v574
    %576 = vdwg.mxu0
    %v577 = vmax.f32 %v482, 0.0
    %v578 = vmax.f32 %v485, 0.0
    %v579 = vmax.f32 %v488, 0.0
    %v580 = vmax.f32 %v491, 0.0
    %v581 = vmax.f32 %v494, 0.0
    %v582 = vmax.f32 %v497, 0.0
    %v583 = vmax.f32 %v500, 0.0
    %v584 = vmax.f32 %v503, 0.0
    %v585 = vmax.f32 %v506, 0.0
    %v586 = vmax.f32 %v509, 0.0
    %v587 = vmax.f32 %v512, 0.0
    %v588 = vmax.f32 %v515, 0.0
    %v589 = vmax.f32 %v518, 0.0
    %v590 = vmax.f32 %v521, 0.0
    %v591 = vmax.f32 %v524, 0.0
    %v592 = vmax.f32 %v527, 0.0
    %v593 = vmax.f32 %v530, 0.0
    %v594 = vmax.f32 %v533, 0.0
    %v595 = vmax.f32 %v536, 0.0
    %v596 = vmax.f32 %v539, 0.0
    %v597 = vmax.f32 %v542, 0.0
    %v598 = vmax.f32 %v545, 0.0
    %v599 = vmax.f32 %v548, 0.0
    %v600 = vmax.f32 %v551, 0.0
    %v601 = vmax.f32 %v554, 0.0
    %v602 = vmax.f32 %v557, 0.0
    %v603 = vmax.f32 %v560, 0.0
    %v604 = vmax.f32 %v563, 0.0
    %v605 = vmax.f32 %v566, 0.0
    %v606 = vmax.f32 %v569, 0.0
    %v607 = vmax.f32 %v572, 0.0
    %v608 = vmax.f32 %v575, 0.0
    %v609 = vld [vmem:[%s3] sm:$0xff]
    %v610 = vld [vmem:[%s3 + $0x8] sm:$0xff]
    %v611 = vld [vmem:[%s3 + $0x10] sm:$0xff]
    %v612 = vld [vmem:[%s3 + $0x18] sm:$0xff]
    %vm613 = vcmask 261120
    %v615 = vsel %vm613, %v577, 0
    %v618 = vsel %vm613, %v578, 0
    %v621 = vsel %vm613, %v579, 0
    %v624 = vsel %vm613, %v580, 0
    %v627 = vsel %vm613, %v581, 0
    %v630 = vsel %vm613, %v582, 0
    %v633 = vsel %vm613, %v583, 0
    %v636 = vsel %vm613, %v584, 0
    %v639 = vsel %vm613, %v585, 0
    %v642 = vsel %vm613, %v586, 0
    %v645 = vsel %vm613, %v587, 0
    %v648 = vsel %vm613, %v588, 0
    %v651 = vsel %vm613, %v589, 0
    %v654 = vsel %vm613, %v590, 0
    %v657 = vsel %vm613, %v591, 0
    %v660 = vsel %vm613, %v592, 0
    %v663 = vsel %vm613, %v593, 0
    %v666 = vsel %vm613, %v594, 0
    %v669 = vsel %vm613, %v595, 0
    %v672 = vsel %vm613, %v596, 0
    %v675 = vsel %vm613, %v597, 0
    %v678 = vsel %vm613, %v598, 0
    %v681 = vsel %vm613, %v599, 0
    %v684 = vsel %vm613, %v600, 0
    %v687 = vsel %vm613, %v601, 0
    %v690 = vsel %vm613, %v602, 0
    %v693 = vsel %vm613, %v603, 0
    %v696 = vsel %vm613, %v604, 0
    %v699 = vsel %vm613, %v605, 0
    %v702 = vsel %vm613, %v606, 0
    %v705 = vsel %vm613, %v607, 0
    %v708 = vsel %vm613, %v608, 0
    %710 = vmatpush.msra.mxu0 0.0
    %711 = vmatpush.msra.mxu0 0.0
    %712 = vmatpush.msra.mxu0 0.0
    %713 = vmatpush.msra.mxu0 0.0
    %714 = vmatpush.msra.mxu0 0.0
    %715 = vmatpush.msra.mxu0 0.0
    %716 = vmatpush.msra.mxu0 0.0
    %717 = vmatpush.msra.mxu0 0.0
    %718 = vmatpush.msra.mxu0 0.0
    %719 = vmatpush.msra.mxu0 0.0
    %720 = vmatpush.msra.mxu0 0.0
    %721 = vmatpush.msra.mxu0 0.0
    %722 = vmatpush.msra.mxu0 %v612
    %723 = vmatpush.msra.mxu0 %v611
    %724 = vmatpush.msra.mxu0 %v610
    %725 = vmatpush.msra.mxu0 %v609
    %726 = vmatmul.f32.gmra.mxu0 %v615
    %v727 = vpop.f32.mrf.mxu0
    %v728 = vadd.f32 0.0, %v727
    %729 = vmatmul.f32.gmra.mxu0 %v618
    %v730 = vpop.f32.mrf.mxu0
    %v731 = vadd.f32 0.0, %v730
    %732 = vmatmul.f32.gmra.mxu0 %v621
    %v733 = vpop.f32.mrf.mxu0
    %v734 = vadd.f32 0.0, %v733
    %735 = vmatmul.f32.gmra.mxu0 %v624
    %v736 = vpop.f32.mrf.mxu0
    %v737 = vadd.f32 0.0, %v736
    %738 = vmatmul.f32.gmra.mxu0 %v627
    %v739 = vpop.f32.mrf.mxu0
    %v740 = vadd.f32 0.0, %v739
    %741 = vmatmul.f32.gmra.mxu0 %v630
    %v742 = vpop.f32.mrf.mxu0
    %v743 = vadd.f32 0.0, %v742
    %744 = vmatmul.f32.gmra.mxu0 %v633
    %v745 = vpop.f32.mrf.mxu0
    %v746 = vadd.f32 0.0, %v745
    %747 = vmatmul.f32.gmra.mxu0 %v636
    %v748 = vpop.f32.mrf.mxu0
    %v749 = vadd.f32 0.0, %v748
    %750 = vmatmul.f32.gmra.mxu0 %v639
    %v751 = vpop.f32.mrf.mxu0
    %v752 = vadd.f32 0.0, %v751
    %753 = vmatmul.f32.gmra.mxu0 %v642
    %v754 = vpop.f32.mrf.mxu0
    %v755 = vadd.f32 0.0, %v754
    %756 = vmatmul.f32.gmra.mxu0 %v645
    %v757 = vpop.f32.mrf.mxu0
    %v758 = vadd.f32 0.0, %v757
    %759 = vmatmul.f32.gmra.mxu0 %v648
    %v760 = vpop.f32.mrf.mxu0
    %v761 = vadd.f32 0.0, %v760
    %762 = vmatmul.f32.gmra.mxu0 %v651
    %v763 = vpop.f32.mrf.mxu0
    %v764 = vadd.f32 0.0, %v763
    %765 = vmatmul.f32.gmra.mxu0 %v654
    %v766 = vpop.f32.mrf.mxu0
    %v767 = vadd.f32 0.0, %v766
    %768 = vmatmul.f32.gmra.mxu0 %v657
    %v769 = vpop.f32.mrf.mxu0
    %v770 = vadd.f32 0.0, %v769
    %771 = vmatmul.f32.gmra.mxu0 %v660
    %v772 = vpop.f32.mrf.mxu0
    %v773 = vadd.f32 0.0, %v772
    %774 = vmatmul.f32.gmra.mxu0 %v663
    %v775 = vpop.f32.mrf.mxu0
    %v776 = vadd.f32 0.0, %v775
    %777 = vmatmul.f32.gmra.mxu0 %v666
    %v778 = vpop.f32.mrf.mxu0
    %v779 = vadd.f32 0.0, %v778
    %780 = vmatmul.f32.gmra.mxu0 %v669
    %v781 = vpop.f32.mrf.mxu0
    %v782 = vadd.f32 0.0, %v781
    %783 = vmatmul.f32.gmra.mxu0 %v672
    %v784 = vpop.f32.mrf.mxu0
    %v785 = vadd.f32 0.0, %v784
    %786 = vmatmul.f32.gmra.mxu0 %v675
    %v787 = vpop.f32.mrf.mxu0
    %v788 = vadd.f32 0.0, %v787
    %789 = vmatmul.f32.gmra.mxu0 %v678
    %v790 = vpop.f32.mrf.mxu0
    %v791 = vadd.f32 0.0, %v790
    %792 = vmatmul.f32.gmra.mxu0 %v681
    %v793 = vpop.f32.mrf.mxu0
    %v794 = vadd.f32 0.0, %v793
    %795 = vmatmul.f32.gmra.mxu0 %v684
    %v796 = vpop.f32.mrf.mxu0
    %v797 = vadd.f32 0.0, %v796
    %798 = vmatmul.f32.gmra.mxu0 %v687
    %v799 = vpop.f32.mrf.mxu0
    %v800 = vadd.f32 0.0, %v799
    %801 = vmatmul.f32.gmra.mxu0 %v690
    %v802 = vpop.f32.mrf.mxu0
    %v803 = vadd.f32 0.0, %v802
    %804 = vmatmul.f32.gmra.mxu0 %v693
    %v805 = vpop.f32.mrf.mxu0
    %v806 = vadd.f32 0.0, %v805
    %807 = vmatmul.f32.gmra.mxu0 %v696
    %v808 = vpop.f32.mrf.mxu0
    %v809 = vadd.f32 0.0, %v808
    %810 = vmatmul.f32.gmra.mxu0 %v699
    %v811 = vpop.f32.mrf.mxu0
    %v812 = vadd.f32 0.0, %v811
    %813 = vmatmul.f32.gmra.mxu0 %v702
    %v814 = vpop.f32.mrf.mxu0
    %v815 = vadd.f32 0.0, %v814
    %816 = vmatmul.f32.gmra.mxu0 %v705
    %v817 = vpop.f32.mrf.mxu0
    %v818 = vadd.f32 0.0, %v817
    %819 = vmatmul.f32.gmra.mxu0 %v708
    %v820 = vpop.f32.mrf.mxu0
    %v821 = vadd.f32 0.0, %v820
    %822 = vdwg.mxu0
    %823 = vmatpush.msra.mxu0 %v773
    %824 = vmatpush.msra.mxu0 %v770
    %825 = vmatpush.msra.mxu0 %v767
    %826 = vmatpush.msra.mxu0 %v764
    %827 = vmatpush.msra.mxu0 %v761
    %828 = vmatpush.msra.mxu0 %v758
    %829 = vmatpush.msra.mxu0 %v755
    %830 = vmatpush.msra.mxu0 %v752
    %831 = vmatpush.msra.mxu0 %v749
    %832 = vmatpush.msra.mxu0 %v746
    %833 = vmatpush.msra.mxu0 %v743
    %834 = vmatpush.msra.mxu0 %v740
    %835 = vmatpush.msra.mxu0 %v737
    %836 = vmatpush.msra.mxu0 %v734
    %837 = vmatpush.msra.mxu0 %v731
    %838 = vmatpush.msra.mxu0 %v728
    %839 = vmatmul.f32.gmra.mxu0 %v287
    %v840 = vpop.f32.mrf.mxu0
    %v841 = vadd.f32 0.0, %v840
    %842 = vmatmul.f32.gmra.mxu0 %v289
    %v843 = vpop.f32.mrf.mxu0
    %v844 = vadd.f32 0.0, %v843
    %845 = vmatmul.f32.gmra.mxu0 %v291
    %v846 = vpop.f32.mrf.mxu0
    %v847 = vadd.f32 0.0, %v846
    %848 = vmatmul.f32.gmra.mxu0 %v293
    %v849 = vpop.f32.mrf.mxu0
    %v850 = vadd.f32 0.0, %v849
    %851 = vmatmul.f32.gmra.mxu0 %v295
    %v852 = vpop.f32.mrf.mxu0
    %v853 = vadd.f32 0.0, %v852
    %854 = vmatmul.f32.gmra.mxu0 %v297
    %v855 = vpop.f32.mrf.mxu0
    %v856 = vadd.f32 0.0, %v855
    %857 = vmatmul.f32.gmra.mxu0 %v299
    %v858 = vpop.f32.mrf.mxu0
    %v859 = vadd.f32 0.0, %v858
    %860 = vmatmul.f32.gmra.mxu0 %v301
    %v861 = vpop.f32.mrf.mxu0
    %v862 = vadd.f32 0.0, %v861
    %863 = vmatmul.f32.gmra.mxu0 %v303
    %v864 = vpop.f32.mrf.mxu0
    %v865 = vadd.f32 0.0, %v864
    %866 = vmatmul.f32.gmra.mxu0 %v305
    %v867 = vpop.f32.mrf.mxu0
    %v868 = vadd.f32 0.0, %v867
    %869 = vmatmul.f32.gmra.mxu0 %v307
    %v870 = vpop.f32.mrf.mxu0
    %v871 = vadd.f32 0.0, %v870
    %872 = vmatmul.f32.gmra.mxu0 %v309
    %v873 = vpop.f32.mrf.mxu0
    %v874 = vadd.f32 0.0, %v873
    %875 = vmatmul.f32.gmra.mxu0 %v311
    %v876 = vpop.f32.mrf.mxu0
    %v877 = vadd.f32 0.0, %v876
    %878 = vmatmul.f32.gmra.mxu0 %v313
    %v879 = vpop.f32.mrf.mxu0
    %v880 = vadd.f32 0.0, %v879
    %881 = vmatmul.f32.gmra.mxu0 %v315
    %v882 = vpop.f32.mrf.mxu0
    %v883 = vadd.f32 0.0, %v882
    %884 = vmatmul.f32.gmra.mxu0 %v317
    %v885 = vpop.f32.mrf.mxu0
    %v886 = vadd.f32 0.0, %v885
    %887 = vmatmul.f32.gmra.mxu0 %v319
    %v888 = vpop.f32.mrf.mxu0
    %v889 = vadd.f32 0.0, %v888
    %890 = vmatmul.f32.gmra.mxu0 %v321
    %v891 = vpop.f32.mrf.mxu0
    %v892 = vadd.f32 0.0, %v891
    %893 = vmatmul.f32.gmra.mxu0 %v323
    %v894 = vpop.f32.mrf.mxu0
    %v895 = vadd.f32 0.0, %v894
    %896 = vmatmul.f32.gmra.mxu0 %v325
    %v897 = vpop.f32.mrf.mxu0
    %v898 = vadd.f32 0.0, %v897
    %899 = vmatmul.f32.gmra.mxu0 %v327
    %v900 = vpop.f32.mrf.mxu0
    %v901 = vadd.f32 0.0, %v900
    %902 = vmatmul.f32.gmra.mxu0 %v329
    %v903 = vpop.f32.mrf.mxu0
    %v904 = vadd.f32 0.0, %v903
    %905 = vmatmul.f32.gmra.mxu0 %v331
    %v906 = vpop.f32.mrf.mxu0
    %v907 = vadd.f32 0.0, %v906
    %908 = vmatmul.f32.gmra.mxu0 %v333
    %v909 = vpop.f32.mrf.mxu0
    %v910 = vadd.f32 0.0, %v909
    %911 = vmatmul.f32.gmra.mxu0 %v335
    %v912 = vpop.f32.mrf.mxu0
    %v913 = vadd.f32 0.0, %v912
    %914 = vmatmul.f32.gmra.mxu0 %v337
    %v915 = vpop.f32.mrf.mxu0
    %v916 = vadd.f32 0.0, %v915
    %917 = vmatmul.f32.gmra.mxu0 %v339
    %v918 = vpop.f32.mrf.mxu0
    %v919 = vadd.f32 0.0, %v918
    %920 = vmatmul.f32.gmra.mxu0 %v341
    %v921 = vpop.f32.mrf.mxu0
    %v922 = vadd.f32 0.0, %v921
    %923 = vmatmul.f32.gmra.mxu0 %v343
    %v924 = vpop.f32.mrf.mxu0
    %v925 = vadd.f32 0.0, %v924
    %926 = vmatmul.f32.gmra.mxu0 %v345
    %v927 = vpop.f32.mrf.mxu0
    %v928 = vadd.f32 0.0, %v927
    %929 = vmatmul.f32.gmra.mxu0 %v347
    %v930 = vpop.f32.mrf.mxu0
    %v931 = vadd.f32 0.0, %v930
    %932 = vmatmul.f32.gmra.mxu0 %v349
    %v933 = vpop.f32.mrf.mxu0
    %v934 = vadd.f32 0.0, %v933
    %935 = vdwg.mxu0
    %936 = vmatpush.msra.mxu0 %v821
    %937 = vmatpush.msra.mxu0 %v818
    %938 = vmatpush.msra.mxu0 %v815
    %939 = vmatpush.msra.mxu0 %v812
    %940 = vmatpush.msra.mxu0 %v809
    %941 = vmatpush.msra.mxu0 %v806
    %942 = vmatpush.msra.mxu0 %v803
    %943 = vmatpush.msra.mxu0 %v800
    %944 = vmatpush.msra.mxu0 %v797
    %945 = vmatpush.msra.mxu0 %v794
    %946 = vmatpush.msra.mxu0 %v791
    %947 = vmatpush.msra.mxu0 %v788
    %948 = vmatpush.msra.mxu0 %v785
    %949 = vmatpush.msra.mxu0 %v782
    %950 = vmatpush.msra.mxu0 %v779
    %951 = vmatpush.msra.mxu0 %v776
    %952 = vmatmul.f32.gmra.mxu0 %v288
    %v953 = vpop.f32.mrf.mxu0
    %v954 = vadd.f32 %v841, %v953
    %955 = vmatmul.f32.gmra.mxu0 %v290
    %v956 = vpop.f32.mrf.mxu0
    %v957 = vadd.f32 %v844, %v956
    %958 = vmatmul.f32.gmra.mxu0 %v292
    %v959 = vpop.f32.mrf.mxu0
    %v960 = vadd.f32 %v847, %v959
    %961 = vmatmul.f32.gmra.mxu0 %v294
    %v962 = vpop.f32.mrf.mxu0
    %v963 = vadd.f32 %v850, %v962
    %964 = vmatmul.f32.gmra.mxu0 %v296
    %v965 = vpop.f32.mrf.mxu0
    %v966 = vadd.f32 %v853, %v965
    %967 = vmatmul.f32.gmra.mxu0 %v298
    %v968 = vpop.f32.mrf.mxu0
    %v969 = vadd.f32 %v856, %v968
    %970 = vmatmul.f32.gmra.mxu0 %v300
    %v971 = vpop.f32.mrf.mxu0
    %v972 = vadd.f32 %v859, %v971
    %973 = vmatmul.f32.gmra.mxu0 %v302
    %v974 = vpop.f32.mrf.mxu0
    %v975 = vadd.f32 %v862, %v974
    %976 = vmatmul.f32.gmra.mxu0 %v304
    %v977 = vpop.f32.mrf.mxu0
    %v978 = vadd.f32 %v865, %v977
    %979 = vmatmul.f32.gmra.mxu0 %v306
    %v980 = vpop.f32.mrf.mxu0
    %v981 = vadd.f32 %v868, %v980
    %982 = vmatmul.f32.gmra.mxu0 %v308
    %v983 = vpop.f32.mrf.mxu0
    %v984 = vadd.f32 %v871, %v983
    %985 = vmatmul.f32.gmra.mxu0 %v310
    %v986 = vpop.f32.mrf.mxu0
    %v987 = vadd.f32 %v874, %v986
    %988 = vmatmul.f32.gmra.mxu0 %v312
    %v989 = vpop.f32.mrf.mxu0
    %v990 = vadd.f32 %v877, %v989
    %991 = vmatmul.f32.gmra.mxu0 %v314
    %v992 = vpop.f32.mrf.mxu0
    %v993 = vadd.f32 %v880, %v992
    %994 = vmatmul.f32.gmra.mxu0 %v316
    %v995 = vpop.f32.mrf.mxu0
    %v996 = vadd.f32 %v883, %v995
    %997 = vmatmul.f32.gmra.mxu0 %v318
    %v998 = vpop.f32.mrf.mxu0
    %v999 = vadd.f32 %v886, %v998
    %1000 = vmatmul.f32.gmra.mxu0 %v320
    %v1001 = vpop.f32.mrf.mxu0
    %v1002 = vadd.f32 %v889, %v1001
    %1003 = vmatmul.f32.gmra.mxu0 %v322
    %v1004 = vpop.f32.mrf.mxu0
    %v1005 = vadd.f32 %v892, %v1004
    %1006 = vmatmul.f32.gmra.mxu0 %v324
    %v1007 = vpop.f32.mrf.mxu0
    %v1008 = vadd.f32 %v895, %v1007
    %1009 = vmatmul.f32.gmra.mxu0 %v326
    %v1010 = vpop.f32.mrf.mxu0
    %v1011 = vadd.f32 %v898, %v1010
    %1012 = vmatmul.f32.gmra.mxu0 %v328
    %v1013 = vpop.f32.mrf.mxu0
    %v1014 = vadd.f32 %v901, %v1013
    %1015 = vmatmul.f32.gmra.mxu0 %v330
    %v1016 = vpop.f32.mrf.mxu0
    %v1017 = vadd.f32 %v904, %v1016
    %1018 = vmatmul.f32.gmra.mxu0 %v332
    %v1019 = vpop.f32.mrf.mxu0
    %v1020 = vadd.f32 %v907, %v1019
    %1021 = vmatmul.f32.gmra.mxu0 %v334
    %v1022 = vpop.f32.mrf.mxu0
    %v1023 = vadd.f32 %v910, %v1022
    %1024 = vmatmul.f32.gmra.mxu0 %v336
    %v1025 = vpop.f32.mrf.mxu0
    %v1026 = vadd.f32 %v913, %v1025
    %1027 = vmatmul.f32.gmra.mxu0 %v338
    %v1028 = vpop.f32.mrf.mxu0
    %v1029 = vadd.f32 %v916, %v1028
    %1030 = vmatmul.f32.gmra.mxu0 %v340
    %v1031 = vpop.f32.mrf.mxu0
    %v1032 = vadd.f32 %v919, %v1031
    %1033 = vmatmul.f32.gmra.mxu0 %v342
    %v1034 = vpop.f32.mrf.mxu0
    %v1035 = vadd.f32 %v922, %v1034
    %1036 = vmatmul.f32.gmra.mxu0 %v344
    %v1037 = vpop.f32.mrf.mxu0
    %v1038 = vadd.f32 %v925, %v1037
    %1039 = vmatmul.f32.gmra.mxu0 %v346
    %v1040 = vpop.f32.mrf.mxu0
    %v1041 = vadd.f32 %v928, %v1040
    %1042 = vmatmul.f32.gmra.mxu0 %v348
    %v1043 = vpop.f32.mrf.mxu0
    %v1044 = vadd.f32 %v931, %v1043
    %1045 = vmatmul.f32.gmra.mxu0 %v350
    %v1046 = vpop.f32.mrf.mxu0
    %v1047 = vadd.f32 %v934, %v1046
    %1048 = vdwg.mxu0
    %vm1049 = vcmask 130048
    %1050 = vst.msk [vmem:[%s5] sm:$0xff] %vm1049, %v954
    %1051 = vst.msk [vmem:[%s5 + $0x8] sm:$0xff] %vm1049, %v957
    %1052 = vst.msk [vmem:[%s5 + $0x10] sm:$0xff] %vm1049, %v960
    %1053 = vst.msk [vmem:[%s5 + $0x18] sm:$0xff] %vm1049, %v963
    %1054 = vst.msk [vmem:[%s5 + $0x20] sm:$0xff] %vm1049, %v966
    %1055 = vst.msk [vmem:[%s5 + $0x28] sm:$0xff] %vm1049, %v969
    %1056 = vst.msk [vmem:[%s5 + $0x30] sm:$0xff] %vm1049, %v972
    %1057 = vst.msk [vmem:[%s5 + $0x38] sm:$0xff] %vm1049, %v975
    %1058 = vst.msk [vmem:[%s5 + $0x40] sm:$0xff] %vm1049, %v978
    %1059 = vst.msk [vmem:[%s5 + $0x48] sm:$0xff] %vm1049, %v981
    %1060 = vst.msk [vmem:[%s5 + $0x50] sm:$0xff] %vm1049, %v984
    %1061 = vst.msk [vmem:[%s5 + $0x58] sm:$0xff] %vm1049, %v987
    %1062 = vst.msk [vmem:[%s5 + $0x60] sm:$0xff] %vm1049, %v990
    %1063 = vst.msk [vmem:[%s5 + $0x68] sm:$0xff] %vm1049, %v993
    %1064 = vst.msk [vmem:[%s5 + $0x70] sm:$0xff] %vm1049, %v996
    %1065 = vst.msk [vmem:[%s5 + $0x78] sm:$0xff] %vm1049, %v999
    %1066 = vst.msk [vmem:[%s5 + $0x80] sm:$0xff] %vm1049, %v1002
    %1067 = vst.msk [vmem:[%s5 + $0x88] sm:$0xff] %vm1049, %v1005
    %1068 = vst.msk [vmem:[%s5 + $0x90] sm:$0xff] %vm1049, %v1008
    %1069 = vst.msk [vmem:[%s5 + $0x98] sm:$0xff] %vm1049, %v1011
    %1070 = vst.msk [vmem:[%s5 + $0xa0] sm:$0xff] %vm1049, %v1014
    %1071 = vst.msk [vmem:[%s5 + $0xa8] sm:$0xff] %vm1049, %v1017
    %1072 = vst.msk [vmem:[%s5 + $0xb0] sm:$0xff] %vm1049, %v1020
    %1073 = vst.msk [vmem:[%s5 + $0xb8] sm:$0xff] %vm1049, %v1023
    %1074 = vst.msk [vmem:[%s5 + $0xc0] sm:$0xff] %vm1049, %v1026
    %1075 = vst.msk [vmem:[%s5 + $0xc8] sm:$0xff] %vm1049, %v1029
    %1076 = vst.msk [vmem:[%s5 + $0xd0] sm:$0xff] %vm1049, %v1032
    %1077 = vst.msk [vmem:[%s5 + $0xd8] sm:$0xff] %vm1049, %v1035
    %1078 = vst.msk [vmem:[%s5 + $0xe0] sm:$0xff] %vm1049, %v1038
    %1079 = vst.msk [vmem:[%s5 + $0xe8] sm:$0xff] %vm1049, %v1041
    %1080 = vst.msk [vmem:[%s5 + $0xf0] sm:$0xff] %vm1049, %v1044
    %1081 = vst.msk [vmem:[%s5 + $0xf8] sm:$0xff] %vm1049, %v1047
    %1114 = vrot.lane.b32.xlu0 %v954, 112
    %v1115 = vpop.permute.xlu0 %1114
    %1116 = vrot.lane.b32.xlu0 %v957, 112
    %v1117 = vpop.permute.xlu0 %1116
    %1118 = vrot.lane.b32.xlu0 %v960, 112
    %v1119 = vpop.permute.xlu0 %1118
    %1120 = vrot.lane.b32.xlu0 %v963, 112
    %v1121 = vpop.permute.xlu0 %1120
    %1122 = vrot.lane.b32.xlu0 %v966, 112
    %v1123 = vpop.permute.xlu0 %1122
    %1124 = vrot.lane.b32.xlu0 %v969, 112
    %v1125 = vpop.permute.xlu0 %1124
    %1126 = vrot.lane.b32.xlu0 %v972, 112
    %v1127 = vpop.permute.xlu0 %1126
    %1128 = vrot.lane.b32.xlu0 %v975, 112
    %v1129 = vpop.permute.xlu0 %1128
    %1130 = vrot.lane.b32.xlu0 %v978, 112
    %v1131 = vpop.permute.xlu0 %1130
    %1132 = vrot.lane.b32.xlu0 %v981, 112
    %v1133 = vpop.permute.xlu0 %1132
    %1134 = vrot.lane.b32.xlu0 %v984, 112
    %v1135 = vpop.permute.xlu0 %1134
    %1136 = vrot.lane.b32.xlu0 %v987, 112
    %v1137 = vpop.permute.xlu0 %1136
    %1138 = vrot.lane.b32.xlu0 %v990, 112
    %v1139 = vpop.permute.xlu0 %1138
    %1140 = vrot.lane.b32.xlu0 %v993, 112
    %v1141 = vpop.permute.xlu0 %1140
    %1142 = vrot.lane.b32.xlu0 %v996, 112
    %v1143 = vpop.permute.xlu0 %1142
    %1144 = vrot.lane.b32.xlu0 %v999, 112
    %v1145 = vpop.permute.xlu0 %1144
    %1146 = vrot.lane.b32.xlu0 %v1002, 112
    %v1147 = vpop.permute.xlu0 %1146
    %1148 = vrot.lane.b32.xlu0 %v1005, 112
    %v1149 = vpop.permute.xlu0 %1148
    %1150 = vrot.lane.b32.xlu0 %v1008, 112
    %v1151 = vpop.permute.xlu0 %1150
    %1152 = vrot.lane.b32.xlu0 %v1011, 112
    %v1153 = vpop.permute.xlu0 %1152
    %1154 = vrot.lane.b32.xlu0 %v1014, 112
    %v1155 = vpop.permute.xlu0 %1154
    %1156 = vrot.lane.b32.xlu0 %v1017, 112
    %v1157 = vpop.permute.xlu0 %1156
    %1158 = vrot.lane.b32.xlu0 %v1020, 112
    %v1159 = vpop.permute.xlu0 %1158
    %1160 = vrot.lane.b32.xlu0 %v1023, 112
    %v1161 = vpop.permute.xlu0 %1160
    %1162 = vrot.lane.b32.xlu0 %v1026, 112
    %v1163 = vpop.permute.xlu0 %1162
    %1164 = vrot.lane.b32.xlu0 %v1029, 112
    %v1165 = vpop.permute.xlu0 %1164
    %1166 = vrot.lane.b32.xlu0 %v1032, 112
    %v1167 = vpop.permute.xlu0 %1166
    %1168 = vrot.lane.b32.xlu0 %v1035, 112
    %v1169 = vpop.permute.xlu0 %1168
    %1170 = vrot.lane.b32.xlu0 %v1038, 112
    %v1171 = vpop.permute.xlu0 %1170
    %1172 = vrot.lane.b32.xlu0 %v1041, 112
    %v1173 = vpop.permute.xlu0 %1172
    %1174 = vrot.lane.b32.xlu0 %v1044, 112
    %v1175 = vpop.permute.xlu0 %1174
    %1176 = vrot.lane.b32.xlu0 %v1047, 112
    %v1177 = vpop.permute.xlu0 %1176
    %1210 = vst.msk [vmem:[%s6] sm:$0xff] %vm1049, %v1115
    %1211 = vst.msk [vmem:[%s6 + $0x8] sm:$0xff] %vm1049, %v1117
    %1212 = vst.msk [vmem:[%s6 + $0x10] sm:$0xff] %vm1049, %v1119
    %1213 = vst.msk [vmem:[%s6 + $0x18] sm:$0xff] %vm1049, %v1121
    %1214 = vst.msk [vmem:[%s6 + $0x20] sm:$0xff] %vm1049, %v1123
    %1215 = vst.msk [vmem:[%s6 + $0x28] sm:$0xff] %vm1049, %v1125
    %1216 = vst.msk [vmem:[%s6 + $0x30] sm:$0xff] %vm1049, %v1127
    %1217 = vst.msk [vmem:[%s6 + $0x38] sm:$0xff] %vm1049, %v1129
    %1218 = vst.msk [vmem:[%s6 + $0x40] sm:$0xff] %vm1049, %v1131
    %1219 = vst.msk [vmem:[%s6 + $0x48] sm:$0xff] %vm1049, %v1133
    %1220 = vst.msk [vmem:[%s6 + $0x50] sm:$0xff] %vm1049, %v1135
    %1221 = vst.msk [vmem:[%s6 + $0x58] sm:$0xff] %vm1049, %v1137
    %1222 = vst.msk [vmem:[%s6 + $0x60] sm:$0xff] %vm1049, %v1139
    %1223 = vst.msk [vmem:[%s6 + $0x68] sm:$0xff] %vm1049, %v1141
    %1224 = vst.msk [vmem:[%s6 + $0x70] sm:$0xff] %vm1049, %v1143
    %1225 = vst.msk [vmem:[%s6 + $0x78] sm:$0xff] %vm1049, %v1145
    %1226 = vst.msk [vmem:[%s6 + $0x80] sm:$0xff] %vm1049, %v1147
    %1227 = vst.msk [vmem:[%s6 + $0x88] sm:$0xff] %vm1049, %v1149
    %1228 = vst.msk [vmem:[%s6 + $0x90] sm:$0xff] %vm1049, %v1151
    %1229 = vst.msk [vmem:[%s6 + $0x98] sm:$0xff] %vm1049, %v1153
    %1230 = vst.msk [vmem:[%s6 + $0xa0] sm:$0xff] %vm1049, %v1155
    %1231 = vst.msk [vmem:[%s6 + $0xa8] sm:$0xff] %vm1049, %v1157
    %1232 = vst.msk [vmem:[%s6 + $0xb0] sm:$0xff] %vm1049, %v1159
    %1233 = vst.msk [vmem:[%s6 + $0xb8] sm:$0xff] %vm1049, %v1161
    %1234 = vst.msk [vmem:[%s6 + $0xc0] sm:$0xff] %vm1049, %v1163
    %1235 = vst.msk [vmem:[%s6 + $0xc8] sm:$0xff] %vm1049, %v1165
    %1236 = vst.msk [vmem:[%s6 + $0xd0] sm:$0xff] %vm1049, %v1167
    %1237 = vst.msk [vmem:[%s6 + $0xd8] sm:$0xff] %vm1049, %v1169
    %1238 = vst.msk [vmem:[%s6 + $0xe0] sm:$0xff] %vm1049, %v1171
    %1239 = vst.msk [vmem:[%s6 + $0xe8] sm:$0xff] %vm1049, %v1173
    %1240 = vst.msk [vmem:[%s6 + $0xf0] sm:$0xff] %vm1049, %v1175
    %1241 = vst.msk [vmem:[%s6 + $0xf8] sm:$0xff] %vm1049, %v1177
    %v1242 = vsel %vm1049, %v954, 0
    %v1244 = vsel %vm1049, %v957, 0
    %v1246 = vsel %vm1049, %v960, 0
    %v1248 = vsel %vm1049, %v963, 0
    %v1250 = vsel %vm1049, %v966, 0
    %v1252 = vsel %vm1049, %v969, 0
    %v1254 = vsel %vm1049, %v972, 0
    %v1256 = vsel %vm1049, %v975, 0
    %v1258 = vsel %vm1049, %v978, 0
    %v1260 = vsel %vm1049, %v981, 0
    %v1262 = vsel %vm1049, %v984, 0
    %v1264 = vsel %vm1049, %v987, 0
    %v1266 = vsel %vm1049, %v990, 0
    %v1268 = vsel %vm1049, %v993, 0
    %v1270 = vsel %vm1049, %v996, 0
    %v1272 = vsel %vm1049, %v999, 0
    %v1274 = vsel %vm1049, %v1002, 0
    %v1276 = vsel %vm1049, %v1005, 0
    %v1278 = vsel %vm1049, %v1008, 0
    %v1280 = vsel %vm1049, %v1011, 0
    %v1282 = vsel %vm1049, %v1014, 0
    %v1284 = vsel %vm1049, %v1017, 0
    %v1286 = vsel %vm1049, %v1020, 0
    %v1288 = vsel %vm1049, %v1023, 0
    %v1290 = vsel %vm1049, %v1026, 0
    %v1292 = vsel %vm1049, %v1029, 0
    %v1294 = vsel %vm1049, %v1032, 0
    %v1296 = vsel %vm1049, %v1035, 0
    %v1298 = vsel %vm1049, %v1038, 0
    %v1300 = vsel %vm1049, %v1041, 0
    %v1302 = vsel %vm1049, %v1044, 0
    %v1304 = vsel %vm1049, %v1047, 0
    %1306 = vmatpush.xpose.msra.mxu0 %v1272
    %1307 = vmatpush.xpose.msra.mxu0 %v1270
    %1308 = vmatpush.xpose.msra.mxu0 %v1268
    %1309 = vmatpush.xpose.msra.mxu0 %v1266
    %1310 = vmatpush.xpose.msra.mxu0 %v1264
    %1311 = vmatpush.xpose.msra.mxu0 %v1262
    %1312 = vmatpush.xpose.msra.mxu0 %v1260
    %1313 = vmatpush.xpose.msra.mxu0 %v1258
    %1314 = vmatpush.xpose.msra.mxu0 %v1256
    %1315 = vmatpush.xpose.msra.mxu0 %v1254
    %1316 = vmatpush.xpose.msra.mxu0 %v1252
    %1317 = vmatpush.xpose.msra.mxu0 %v1250
    %1318 = vmatpush.xpose.msra.mxu0 %v1248
    %1319 = vmatpush.xpose.msra.mxu0 %v1246
    %1320 = vmatpush.xpose.msra.mxu0 %v1244
    %1321 = vmatpush.xpose.msra.mxu0 %v1242
    %1322 = vmatmul.f32.gmra.mxu0 %v1242
    %v1323 = vpop.f32.mrf.mxu0
    %v1324 = vadd.f32 0.0, %v1323
    %1325 = vmatmul.f32.gmra.mxu0 %v1244
    %v1326 = vpop.f32.mrf.mxu0
    %v1327 = vadd.f32 0.0, %v1326
    %1328 = vmatmul.f32.gmra.mxu0 %v1246
    %v1329 = vpop.f32.mrf.mxu0
    %v1330 = vadd.f32 0.0, %v1329
    %1331 = vmatmul.f32.gmra.mxu0 %v1248
    %v1332 = vpop.f32.mrf.mxu0
    %v1333 = vadd.f32 0.0, %v1332
    %1334 = vmatmul.f32.gmra.mxu0 %v1250
    %v1335 = vpop.f32.mrf.mxu0
    %v1336 = vadd.f32 0.0, %v1335
    %1337 = vmatmul.f32.gmra.mxu0 %v1252
    %v1338 = vpop.f32.mrf.mxu0
    %v1339 = vadd.f32 0.0, %v1338
    %1340 = vmatmul.f32.gmra.mxu0 %v1254
    %v1341 = vpop.f32.mrf.mxu0
    %v1342 = vadd.f32 0.0, %v1341
    %1343 = vmatmul.f32.gmra.mxu0 %v1256
    %v1344 = vpop.f32.mrf.mxu0
    %v1345 = vadd.f32 0.0, %v1344
    %1346 = vmatmul.f32.gmra.mxu0 %v1258
    %v1347 = vpop.f32.mrf.mxu0
    %v1348 = vadd.f32 0.0, %v1347
    %1349 = vmatmul.f32.gmra.mxu0 %v1260
    %v1350 = vpop.f32.mrf.mxu0
    %v1351 = vadd.f32 0.0, %v1350
    %1352 = vmatmul.f32.gmra.mxu0 %v1262
    %v1353 = vpop.f32.mrf.mxu0
    %v1354 = vadd.f32 0.0, %v1353
    %1355 = vmatmul.f32.gmra.mxu0 %v1264
    %v1356 = vpop.f32.mrf.mxu0
    %v1357 = vadd.f32 0.0, %v1356
    %1358 = vmatmul.f32.gmra.mxu0 %v1266
    %v1359 = vpop.f32.mrf.mxu0
    %v1360 = vadd.f32 0.0, %v1359
    %1361 = vmatmul.f32.gmra.mxu0 %v1268
    %v1362 = vpop.f32.mrf.mxu0
    %v1363 = vadd.f32 0.0, %v1362
    %1364 = vmatmul.f32.gmra.mxu0 %v1270
    %v1365 = vpop.f32.mrf.mxu0
    %v1366 = vadd.f32 0.0, %v1365
    %1367 = vmatmul.f32.gmra.mxu0 %v1272
    %v1368 = vpop.f32.mrf.mxu0
    %v1369 = vadd.f32 0.0, %v1368
    %1370 = vmatmul.f32.gmra.mxu0 %v1274
    %v1371 = vpop.f32.mrf.mxu0
    %v1372 = vadd.f32 0.0, %v1371
    %1373 = vmatmul.f32.gmra.mxu0 %v1276
    %v1374 = vpop.f32.mrf.mxu0
    %v1375 = vadd.f32 0.0, %v1374
    %1376 = vmatmul.f32.gmra.mxu0 %v1278
    %v1377 = vpop.f32.mrf.mxu0
    %v1378 = vadd.f32 0.0, %v1377
    %1379 = vmatmul.f32.gmra.mxu0 %v1280
    %v1380 = vpop.f32.mrf.mxu0
    %v1381 = vadd.f32 0.0, %v1380
    %1382 = vmatmul.f32.gmra.mxu0 %v1282
    %v1383 = vpop.f32.mrf.mxu0
    %v1384 = vadd.f32 0.0, %v1383
    %1385 = vmatmul.f32.gmra.mxu0 %v1284
    %v1386 = vpop.f32.mrf.mxu0
    %v1387 = vadd.f32 0.0, %v1386
    %1388 = vmatmul.f32.gmra.mxu0 %v1286
    %v1389 = vpop.f32.mrf.mxu0
    %v1390 = vadd.f32 0.0, %v1389
    %1391 = vmatmul.f32.gmra.mxu0 %v1288
    %v1392 = vpop.f32.mrf.mxu0
    %v1393 = vadd.f32 0.0, %v1392
    %1394 = vmatmul.f32.gmra.mxu0 %v1290
    %v1395 = vpop.f32.mrf.mxu0
    %v1396 = vadd.f32 0.0, %v1395
    %1397 = vmatmul.f32.gmra.mxu0 %v1292
    %v1398 = vpop.f32.mrf.mxu0
    %v1399 = vadd.f32 0.0, %v1398
    %1400 = vmatmul.f32.gmra.mxu0 %v1294
    %v1401 = vpop.f32.mrf.mxu0
    %v1402 = vadd.f32 0.0, %v1401
    %1403 = vmatmul.f32.gmra.mxu0 %v1296
    %v1404 = vpop.f32.mrf.mxu0
    %v1405 = vadd.f32 0.0, %v1404
    %1406 = vmatmul.f32.gmra.mxu0 %v1298
    %v1407 = vpop.f32.mrf.mxu0
    %v1408 = vadd.f32 0.0, %v1407
    %1409 = vmatmul.f32.gmra.mxu0 %v1300
    %v1410 = vpop.f32.mrf.mxu0
    %v1411 = vadd.f32 0.0, %v1410
    %1412 = vmatmul.f32.gmra.mxu0 %v1302
    %v1413 = vpop.f32.mrf.mxu0
    %v1414 = vadd.f32 0.0, %v1413
    %1415 = vmatmul.f32.gmra.mxu0 %v1304
    %v1416 = vpop.f32.mrf.mxu0
    %v1417 = vadd.f32 0.0, %v1416
    %1418 = vdwg.mxu0
    %1419 = vmatpush.xpose.msra.mxu0 %v1304
    %1420 = vmatpush.xpose.msra.mxu0 %v1302
    %1421 = vmatpush.xpose.msra.mxu0 %v1300
    %1422 = vmatpush.xpose.msra.mxu0 %v1298
    %1423 = vmatpush.xpose.msra.mxu0 %v1296
    %1424 = vmatpush.xpose.msra.mxu0 %v1294
    %1425 = vmatpush.xpose.msra.mxu0 %v1292
    %1426 = vmatpush.xpose.msra.mxu0 %v1290
    %1427 = vmatpush.xpose.msra.mxu0 %v1288
    %1428 = vmatpush.xpose.msra.mxu0 %v1286
    %1429 = vmatpush.xpose.msra.mxu0 %v1284
    %1430 = vmatpush.xpose.msra.mxu0 %v1282
    %1431 = vmatpush.xpose.msra.mxu0 %v1280
    %1432 = vmatpush.xpose.msra.mxu0 %v1278
    %1433 = vmatpush.xpose.msra.mxu0 %v1276
    %1434 = vmatpush.xpose.msra.mxu0 %v1274
    %1435 = vmatmul.f32.gmra.mxu0 %v1242
    %v1436 = vpop.f32.mrf.mxu0
    %v1437 = vadd.f32 0.0, %v1436
    %1438 = vmatmul.f32.gmra.mxu0 %v1244
    %v1439 = vpop.f32.mrf.mxu0
    %v1440 = vadd.f32 0.0, %v1439
    %1441 = vmatmul.f32.gmra.mxu0 %v1246
    %v1442 = vpop.f32.mrf.mxu0
    %v1443 = vadd.f32 0.0, %v1442
    %1444 = vmatmul.f32.gmra.mxu0 %v1248
    %v1445 = vpop.f32.mrf.mxu0
    %v1446 = vadd.f32 0.0, %v1445
    %1447 = vmatmul.f32.gmra.mxu0 %v1250
    %v1448 = vpop.f32.mrf.mxu0
    %v1449 = vadd.f32 0.0, %v1448
    %1450 = vmatmul.f32.gmra.mxu0 %v1252
    %v1451 = vpop.f32.mrf.mxu0
    %v1452 = vadd.f32 0.0, %v1451
    %1453 = vmatmul.f32.gmra.mxu0 %v1254
    %v1454 = vpop.f32.mrf.mxu0
    %v1455 = vadd.f32 0.0, %v1454
    %1456 = vmatmul.f32.gmra.mxu0 %v1256
    %v1457 = vpop.f32.mrf.mxu0
    %v1458 = vadd.f32 0.0, %v1457
    %1459 = vmatmul.f32.gmra.mxu0 %v1258
    %v1460 = vpop.f32.mrf.mxu0
    %v1461 = vadd.f32 0.0, %v1460
    %1462 = vmatmul.f32.gmra.mxu0 %v1260
    %v1463 = vpop.f32.mrf.mxu0
    %v1464 = vadd.f32 0.0, %v1463
    %1465 = vmatmul.f32.gmra.mxu0 %v1262
    %v1466 = vpop.f32.mrf.mxu0
    %v1467 = vadd.f32 0.0, %v1466
    %1468 = vmatmul.f32.gmra.mxu0 %v1264
    %v1469 = vpop.f32.mrf.mxu0
    %v1470 = vadd.f32 0.0, %v1469
    %1471 = vmatmul.f32.gmra.mxu0 %v1266
    %v1472 = vpop.f32.mrf.mxu0
    %v1473 = vadd.f32 0.0, %v1472
    %1474 = vmatmul.f32.gmra.mxu0 %v1268
    %v1475 = vpop.f32.mrf.mxu0
    %v1476 = vadd.f32 0.0, %v1475
    %1477 = vmatmul.f32.gmra.mxu0 %v1270
    %v1478 = vpop.f32.mrf.mxu0
    %v1479 = vadd.f32 0.0, %v1478
    %1480 = vmatmul.f32.gmra.mxu0 %v1272
    %v1481 = vpop.f32.mrf.mxu0
    %v1482 = vadd.f32 0.0, %v1481
    %1483 = vmatmul.f32.gmra.mxu0 %v1274
    %v1484 = vpop.f32.mrf.mxu0
    %v1485 = vadd.f32 0.0, %v1484
    %1486 = vmatmul.f32.gmra.mxu0 %v1276
    %v1487 = vpop.f32.mrf.mxu0
    %v1488 = vadd.f32 0.0, %v1487
    %1489 = vmatmul.f32.gmra.mxu0 %v1278
    %v1490 = vpop.f32.mrf.mxu0
    %v1491 = vadd.f32 0.0, %v1490
    %1492 = vmatmul.f32.gmra.mxu0 %v1280
    %v1493 = vpop.f32.mrf.mxu0
    %v1494 = vadd.f32 0.0, %v1493
    %1495 = vmatmul.f32.gmra.mxu0 %v1282
    %v1496 = vpop.f32.mrf.mxu0
    %v1497 = vadd.f32 0.0, %v1496
    %1498 = vmatmul.f32.gmra.mxu0 %v1284
    %v1499 = vpop.f32.mrf.mxu0
    %v1500 = vadd.f32 0.0, %v1499
    %1501 = vmatmul.f32.gmra.mxu0 %v1286
    %v1502 = vpop.f32.mrf.mxu0
    %v1503 = vadd.f32 0.0, %v1502
    %1504 = vmatmul.f32.gmra.mxu0 %v1288
    %v1505 = vpop.f32.mrf.mxu0
    %v1506 = vadd.f32 0.0, %v1505
    %1507 = vmatmul.f32.gmra.mxu0 %v1290
    %v1508 = vpop.f32.mrf.mxu0
    %v1509 = vadd.f32 0.0, %v1508
    %1510 = vmatmul.f32.gmra.mxu0 %v1292
    %v1511 = vpop.f32.mrf.mxu0
    %v1512 = vadd.f32 0.0, %v1511
    %1513 = vmatmul.f32.gmra.mxu0 %v1294
    %v1514 = vpop.f32.mrf.mxu0
    %v1515 = vadd.f32 0.0, %v1514
    %1516 = vmatmul.f32.gmra.mxu0 %v1296
    %v1517 = vpop.f32.mrf.mxu0
    %v1518 = vadd.f32 0.0, %v1517
    %1519 = vmatmul.f32.gmra.mxu0 %v1298
    %v1520 = vpop.f32.mrf.mxu0
    %v1521 = vadd.f32 0.0, %v1520
    %1522 = vmatmul.f32.gmra.mxu0 %v1300
    %v1523 = vpop.f32.mrf.mxu0
    %v1524 = vadd.f32 0.0, %v1523
    %1525 = vmatmul.f32.gmra.mxu0 %v1302
    %v1526 = vpop.f32.mrf.mxu0
    %v1527 = vadd.f32 0.0, %v1526
    %1528 = vmatmul.f32.gmra.mxu0 %v1304
    %v1529 = vpop.f32.mrf.mxu0
    %v1530 = vadd.f32 0.0, %v1529
    %1531 = vdwg.mxu0
    %1532 = vst [vmem:[#allocation5] sm:$0xff] %v1324
    %1533 = vst [vmem:[#allocation5 + $0x8] sm:$0xff] %v1437
    %1534 = vst [vmem:[#allocation5 + $0x10] sm:$0xff] %v1327
    %1535 = vst [vmem:[#allocation5 + $0x18] sm:$0xff] %v1440
    %1536 = vst [vmem:[#allocation5 + $0x20] sm:$0xff] %v1330
    %1537 = vst [vmem:[#allocation5 + $0x28] sm:$0xff] %v1443
    %1538 = vst [vmem:[#allocation5 + $0x30] sm:$0xff] %v1333
    %1539 = vst [vmem:[#allocation5 + $0x38] sm:$0xff] %v1446
    %1540 = vst [vmem:[#allocation5 + $0x40] sm:$0xff] %v1336
    %1541 = vst [vmem:[#allocation5 + $0x48] sm:$0xff] %v1449
    %1542 = vst [vmem:[#allocation5 + $0x50] sm:$0xff] %v1339
    %1543 = vst [vmem:[#allocation5 + $0x58] sm:$0xff] %v1452
    %1544 = vst [vmem:[#allocation5 + $0x60] sm:$0xff] %v1342
    %1545 = vst [vmem:[#allocation5 + $0x68] sm:$0xff] %v1455
    %1546 = vst [vmem:[#allocation5 + $0x70] sm:$0xff] %v1345
    %1547 = vst [vmem:[#allocation5 + $0x78] sm:$0xff] %v1458
    %1548 = vst [vmem:[#allocation5 + $0x80] sm:$0xff] %v1348
    %1549 = vst [vmem:[#allocation5 + $0x88] sm:$0xff] %v1461
    %1550 = vst [vmem:[#allocation5 + $0x90] sm:$0xff] %v1351
    %1551 = vst [vmem:[#allocation5 + $0x98] sm:$0xff] %v1464
    %1552 = vst [vmem:[#allocation5 + $0xa0] sm:$0xff] %v1354
    %1553 = vst [vmem:[#allocation5 + $0xa8] sm:$0xff] %v1467
    %1554 = vst [vmem:[#allocation5 + $0xb0] sm:$0xff] %v1357
    %1555 = vst [vmem:[#allocation5 + $0xb8] sm:$0xff] %v1470
    %1556 = vst [vmem:[#allocation5 + $0xc0] sm:$0xff] %v1360
    %1557 = vst [vmem:[#allocation5 + $0xc8] sm:$0xff] %v1473
    %1558 = vst [vmem:[#allocation5 + $0xd0] sm:$0xff] %v1363
    %1559 = vst [vmem:[#allocation5 + $0xd8] sm:$0xff] %v1476
    %1560 = vst [vmem:[#allocation5 + $0xe0] sm:$0xff] %v1366
    %1561 = vst [vmem:[#allocation5 + $0xe8] sm:$0xff] %v1479
    %1562 = vst [vmem:[#allocation5 + $0xf0] sm:$0xff] %v1369
    %1563 = vst [vmem:[#allocation5 + $0xf8] sm:$0xff] %v1482
    %1564 = vst [vmem:[#allocation5 + $0x100] sm:$0xff] %v1372
    %1565 = vst [vmem:[#allocation5 + $0x108] sm:$0xff] %v1485
    %1566 = vst [vmem:[#allocation5 + $0x110] sm:$0xff] %v1375
    %1567 = vst [vmem:[#allocation5 + $0x118] sm:$0xff] %v1488
    %1568 = vst [vmem:[#allocation5 + $0x120] sm:$0xff] %v1378
    %1569 = vst [vmem:[#allocation5 + $0x128] sm:$0xff] %v1491
    %1570 = vst [vmem:[#allocation5 + $0x130] sm:$0xff] %v1381
    %1571 = vst [vmem:[#allocation5 + $0x138] sm:$0xff] %v1494
    %1572 = vst [vmem:[#allocation5 + $0x140] sm:$0xff] %v1384
    %1573 = vst [vmem:[#allocation5 + $0x148] sm:$0xff] %v1497
    %1574 = vst [vmem:[#allocation5 + $0x150] sm:$0xff] %v1387
    %1575 = vst [vmem:[#allocation5 + $0x158] sm:$0xff] %v1500
    %1576 = vst [vmem:[#allocation5 + $0x160] sm:$0xff] %v1390
    %1577 = vst [vmem:[#allocation5 + $0x168] sm:$0xff] %v1503
    %1578 = vst [vmem:[#allocation5 + $0x170] sm:$0xff] %v1393
    %1579 = vst [vmem:[#allocation5 + $0x178] sm:$0xff] %v1506
    %1580 = vst [vmem:[#allocation5 + $0x180] sm:$0xff] %v1396
    %1581 = vst [vmem:[#allocation5 + $0x188] sm:$0xff] %v1509
    %1582 = vst [vmem:[#allocation5 + $0x190] sm:$0xff] %v1399
    %1583 = vst [vmem:[#allocation5 + $0x198] sm:$0xff] %v1512
    %1584 = vst [vmem:[#allocation5 + $0x1a0] sm:$0xff] %v1402
    %1585 = vst [vmem:[#allocation5 + $0x1a8] sm:$0xff] %v1515
    %1586 = vst [vmem:[#allocation5 + $0x1b0] sm:$0xff] %v1405
    %1587 = vst [vmem:[#allocation5 + $0x1b8] sm:$0xff] %v1518
    %1588 = vst [vmem:[#allocation5 + $0x1c0] sm:$0xff] %v1408
    %1589 = vst [vmem:[#allocation5 + $0x1c8] sm:$0xff] %v1521
    %1590 = vst [vmem:[#allocation5 + $0x1d0] sm:$0xff] %v1411
    %1591 = vst [vmem:[#allocation5 + $0x1d8] sm:$0xff] %v1524
    %1592 = vst [vmem:[#allocation5 + $0x1e0] sm:$0xff] %v1414
    %1593 = vst [vmem:[#allocation5 + $0x1e8] sm:$0xff] %v1527
    %1594 = vst [vmem:[#allocation5 + $0x1f0] sm:$0xff] %v1417
    %1595 = vst [vmem:[#allocation5 + $0x1f8] sm:$0xff] %v1530
    // Predicated region
    $region22: #{tpu_custom_call.1} parent=1 // pred_check
      _
    $region23: #{tpu_custom_call.1} parent=1 // pred_check_branch
      %1597 = sbr.rel (0) target = $region25
    $region24: #{tpu_custom_call.1} parent=1 // pred_region
      %1599 = vsyncadd [#allocation4], 0
      %s1600 = sshll.u32 [#allocation5], 4
      %s1601 = int_to_ptr.vmem [resolvable:$true] %s1600
      %s1602 = sshll.u32 %s4, 4
      %s1603 = int_to_ptr.hbm [resolvable:$true] %s1602
      %1608 = dma.vmem_to_hbm [thread:$0]  %s1601, 8192, %s1603, [#allocation4], 256, 256, 16
    $region25: #{tpu_custom_call.1} parent=1 // pred_fallthru
      _
    // Predicated region
    $region26: #{tpu_custom_call.1} parent=1 // pred_check
      _
    $region27: #{tpu_custom_call.1} parent=1 // pred_check_branch
      %1610 = sbr.rel (0) target = $region29
    $region28: #{tpu_custom_call.1} parent=1 // pred_region
      _
    $region29: #{tpu_custom_call.1} parent=1 // pred_fallthru
      _
    // Predicated region
    $region30: #{tpu_custom_call.1} parent=1 // pred_check
      _
    $region31: #{tpu_custom_call.1} parent=1 // pred_check_branch
      %1612 = sbr.rel (0) target = $region33
    $region32: #{tpu_custom_call.1} parent=1 // pred_region
      _
    $region33: #{tpu_custom_call.1} parent=1 // pred_fallthru
      _
    // Predicated region
    $region34: #{tpu_custom_call.1} parent=1 // pred_check
      _
    $region35: #{tpu_custom_call.1} parent=1 // pred_check_branch
      %1614 = sbr.rel (0) target = $region37
    $region36: #{tpu_custom_call.1} parent=1 // pred_region
      %1616 = dma.done [#allocation4], 8192
    $region37: #{tpu_custom_call.1} parent=1 // pred_fallthru
      _
    // Predicated region
    $region38: #{tpu_custom_call.1} parent=1 // pred_check
      _
    $region39: #{tpu_custom_call.1} parent=1 // pred_check_branch
      %1618 = sbr.rel (0) target = $region41
    $region40: #{tpu_custom_call.1} parent=1 // pred_region
      _
    $region41: #{tpu_custom_call.1} parent=1 // pred_fallthru
      _
    // Predicated region
    $region42: #{tpu_custom_call.1} parent=1 // pred_check
      _
    $region43: #{tpu_custom_call.1} parent=1 // pred_check_branch
      %1620 = sbr.rel (0) target = $region45
    $region44: #{tpu_custom_call.1} parent=1 // pred_region
      _
    $region45: #{tpu_custom_call.1} parent=1 // pred_fallthru
      _
    %1621 = vsyncpa [#allocation3], 1
    %1622 = vsyncpa [#allocation4], 1

</llo_original>
